<compile_context>
chip_gen: v7x
topology: tpu7x:2x2x1
jax: 0.10.0
libtpu: 0.0.40
codegen_flags: <defaults>
</compile_context>

<pallas_src>
import jax
import jax.numpy as jnp
from jax.experimental import pallas as pl
from jax.experimental.pallas import tpu as pltpu


# ---------------------------------------------------------------------------
# Pallas kernel: one full decoder step (LSTM cell + MemN2N hop + 2x SoftDot
# attention + action logits), whole batch in a single grid-less invocation.
# ---------------------------------------------------------------------------
def decoder_step_kernel(
    xh_ref,       # (B, E+F+H)   bf16  concat(action_embed, feature, h_0)
    c0_ref,       # (B, H)       f32
    ctx_ref,      # (B, S, H)    bf16
    mask_ref,     # (B, 1, S)    f32   1.0 = masked
    mem_ref,      # (B, M, E+F)  bf16  FIFO memory AFTER pushing current input
    w_lstm_ref,   # (E+F+H, 4H)  bf16  stacked [w_ih^T ; w_hh^T]
    b_lstm_ref,   # (1, 4H)      f32   b_ih + b_hh
    bw_ref,       # (H, H)       bf16  self.B weight^T
    bb_ref,       # (1, H)       f32
    a1_in_ref,    # (H, H)       bf16  attn1 linear_in^T
    a1_out_ref,   # (2H, H)      bf16  attn1 linear_out^T
    a2_in_ref,    # (H, H)       bf16
    a2_out_ref,   # (2H, H)      bf16
    memA_ref,     # (H, E+F)     bf16  memory "A" embedding (row-major as stored)
    memC_t_ref,   # (E+F, H)     bf16  memory "C" embedding, transposed
    dec_w_ref,    # (2H, A)      bf16  decoder2action^T
    dec_b_ref,    # (1, A)       f32
    out_ref,      # (B, P)       f32   packed [h1 | c1 | alpha | logit | 0-pad]
):
    f32 = jnp.float32
    bf16 = jnp.bfloat16
    Bn = c0_ref.shape[0]
    H = c0_ref.shape[1]
    S = ctx_ref.shape[1]
    A_dim = dec_w_ref.shape[1]

    # ---- LSTMCell (PyTorch gate order: i, f, g, o), single fused matmul ----
    gates = (
        jnp.dot(xh_ref[...], w_lstm_ref[...], preferred_element_type=f32)
        + b_lstm_ref[...]
    )
    # TODO(synk): if H stays < 128 in production, emit gate-aligned matmul outputs
    # instead of 32-lane slices to avoid lane shuffles.
    i_g = jax.nn.sigmoid(gates[:, 0 * H:1 * H])
    f_g = jax.nn.sigmoid(gates[:, 1 * H:2 * H])
    g_g = jnp.tanh(gates[:, 2 * H:3 * H])
    o_g = jax.nn.sigmoid(gates[:, 3 * H:4 * H])
    c1 = f_g * c0_ref[...] + i_g * g_g
    h1 = o_g * jnp.tanh(c1)
    h1_b = h1.astype(bf16)

    # ---- query projection q = B(h1) ----  (dropout == identity)
    q = jnp.dot(h1_b, bw_ref[...], preferred_element_type=f32) + bb_ref[...]
    q_b = q.astype(bf16)

    # ---- MemN2N single hop over the FIFO memory (factored, all-MXU) ----
    #   p        = softmax_m( mem[b,m,:] . (q A) )          (A pulled onto q)
    #   o_mem    = (sum_m p[b,m] mem[b,m,:]) @ C^T          (C applied after pooling)
    mem = mem_ref[...]                                                   # (B,M,EF) bf16
    qA = jnp.dot(q_b, memA_ref[...], preferred_element_type=f32)        # (B,EF)
    qA3 = qA.astype(bf16)[:, None, :]                                    # (B,1,EF)
    p_logits = jnp.einsum('bqf,bmf->bqm', qA3, mem,
                          preferred_element_type=f32)                    # (B,1,M)
    p = jax.nn.softmax(p_logits, axis=-1)
    pmem = jnp.einsum('bqm,bmf->bqf', p.astype(bf16), mem,
                      preferred_element_type=f32)[:, 0, :]               # (B,EF)
    o_mem = jnp.dot(pmem.astype(bf16), memC_t_ref[...],
                    preferred_element_type=f32)                          # (B,H)
    output = o_mem + q
    output_b = output.astype(bf16)

    ctx = ctx_ref[...]                                                   # (B,S,H) bf16
    mask = mask_ref[...]                                                 # (B,1,S) f32

    # ---- SoftDotAttention (shared body; batched einsums -> MXU) ----
    def soft_dot(h_b, h_f32, w_in_ref, w_out_ref):
        target = jnp.dot(h_b, w_in_ref[...], preferred_element_type=f32)     # (B,H)
        target3 = target.astype(bf16)[:, None, :]                            # (B,1,H)
        attn = jnp.einsum('bqd,bkd->bqk', target3, ctx,
                          preferred_element_type=f32)                        # (B,1,S)
        # large finite negative instead of -inf: fully-masked rows stay NaN-free
        attn = jnp.where(mask > 0.5, -1e30, attn)
        a = jax.nn.softmax(attn, axis=-1)                                    # (B,1,S)
        wctx = jnp.einsum('bqk,bkd->bqd', a.astype(bf16), ctx,
                          preferred_element_type=f32)[:, 0, :]               # (B,H)
        cat = jnp.concatenate([wctx, h_f32], axis=1).astype(bf16)            # (B,2H)
        h_tilde = jnp.tanh(jnp.dot(cat, w_out_ref[...],
                                   preferred_element_type=f32))              # (B,H)
        return h_tilde, a[:, 0, :]                                           # alpha (B,S)

    h_tilde, alpha = soft_dot(h1_b, h1, a1_in_ref, a1_out_ref)
    o_tilde, _ = soft_dot(output_b, output, a2_in_ref, a2_out_ref)

    # ---- action logits: decoder2action(cat(h_tilde, o_tilde)), single dot ----
    ht_cat = jnp.concatenate([h_tilde, o_tilde], axis=1).astype(bf16)        # (B,2H)
    logit = jnp.dot(ht_cat, dec_w_ref[...], preferred_element_type=f32) + dec_b_ref[...]

    # ---- packed lane-dense output slab: [h1 | c1 | alpha | logit | 0-pad] ----
    out_ref[:, 0:H] = h1
    out_ref[:, H:2 * H] = c1
    out_ref[:, 2 * H:2 * H + S] = alpha
    out_ref[:, 2 * H + S:2 * H + S + A_dim] = logit
    used = 2 * H + S + A_dim
    if out_ref.shape[1] > used:
        out_ref[:, used:] = jnp.zeros((Bn, out_ref.shape[1] - used), f32)


# ---------------------------------------------------------------------------
# One-time weight preparation (hoisted out of the per-step path).
# ---------------------------------------------------------------------------
def prepare_decoder_params(params):
    bf16 = jnp.bfloat16
    f32 = jnp.float32
    return {
        "embedding": params["embedding"].astype(f32),
        # stacked LSTM weight/bias so the kernel does one gate matmul
        "w_lstm": jnp.concatenate([params["w_ih"].T, params["w_hh"].T], axis=0).astype(bf16),
        "b_lstm": (params["b_ih"] + params["b_hh"])[None, :].astype(f32),
        "bw": params["B_w"].T.astype(bf16),
        "bb": params["B_b"][None, :].astype(f32),
        "a1_in": params["a1_in"].T.astype(bf16),
        "a1_out": params["a1_out"].T.astype(bf16),   # (2H, H)
        "a2_in": params["a2_in"].T.astype(bf16),
        "a2_out": params["a2_out"].T.astype(bf16),
        "memA": params["memA"].astype(bf16),          # (H, E+F), used as q @ A
        "memC_t": params["memC"].T.astype(bf16),      # (E+F, H)
        "dec_w": params["dec_w"].T.astype(bf16),      # (2H, A)
        "dec_b": params["dec_b"][None, :].astype(f32),
    }


# ---------------------------------------------------------------------------
# Forward wrapper (glue: embedding lookup, FIFO push, bf16 casts, output split)
# ---------------------------------------------------------------------------
def decoder_hist_n2n_attn_forward(prepped, action, feature, h_0, c_0, ctx, memory, ctx_mask):
    bf16 = jnp.bfloat16
    f32 = jnp.float32
    B, S, H = ctx.shape
    M = memory.shape[1]
    A_out = prepped["dec_b"].shape[1]

    # glue: embedding lookup + squeeze (batch x 1 -> batch)
    action_emb = jnp.take(prepped["embedding"], action[:, 0], axis=0)          # (B, E)
    concat_input = jnp.concatenate([action_emb, feature], axis=1)              # (B, E+F)
    EF = concat_input.shape[1]

    # glue: FIFO push of the current input onto the memory buffer.
    # TODO(synk): at production F=2048, replace with a circular-buffer write index
    # + input_output_aliases so only the new row hits HBM each step.
    new_memory = jnp.concatenate([memory[:, 1:, :], concat_input[:, None, :]], axis=1)

    xh = jnp.concatenate([concat_input, h_0], axis=1).astype(bf16)             # (B, E+F+H)
    mem_b = new_memory.astype(bf16)
    ctx_b = ctx.astype(bf16)
    mask3 = ctx_mask.astype(f32).reshape(B, 1, S)

    packed_w = 2 * H + S + A_out
    P = ((packed_w + 127) // 128) * 128                                        # lane-dense slab

    inputs = (
        xh, c_0, ctx_b, mask3, mem_b,
        prepped["w_lstm"], prepped["b_lstm"], prepped["bw"], prepped["bb"],
        prepped["a1_in"], prepped["a1_out"], prepped["a2_in"], prepped["a2_out"],
        prepped["memA"], prepped["memC_t"], prepped["dec_w"], prepped["dec_b"],
    )

    vmem_spec = pl.BlockSpec(memory_space=pltpu.MemorySpace.VMEM)

    # advisory cost estimate for XLA's scheduler
    flops = 2 * B * (
        (EF + H) * 4 * H            # LSTM gates
        + H * H                     # q = B(h1)
        + H * EF + 2 * M * EF + EF * H   # MemN2N hop
        + 2 * (H * H + 2 * S * H + 2 * H * H)  # two SoftDot attentions
        + 2 * H * A_out             # logits
    )
    transcendentals = B * (5 * H + M + 2 * S + 2 * H)
    bytes_accessed = sum(int(x.size) * x.dtype.itemsize for x in inputs) + B * P * 4
    cost = pl.CostEstimate(flops=flops, transcendentals=transcendentals,
                           bytes_accessed=bytes_accessed)

    packed = pl.pallas_call(
        decoder_step_kernel,
        out_shape=jax.ShapeDtypeStruct((B, P), f32),
        in_specs=[vmem_spec] * len(inputs),
        out_specs=vmem_spec,
        compiler_params=pltpu.CompilerParams(
            # explicit scoped-VMEM budget; re-size to the resident weight set
            # when moving to production F=2048 (and to v7x's 64 MiB cap).
            vmem_limit_bytes=32 * 1024 * 1024,
        ),
        cost_estimate=cost,
    )(*inputs)

    h_1 = packed[:, 0:H]
    c_1 = packed[:, H:2 * H]
    alpha = packed[:, 2 * H:2 * H + S]
    logit = packed[:, 2 * H + S:2 * H + S + A_out]
    return h_1, c_1, new_memory, alpha, logit


# ---------------------------------------------------------------------------
# Deterministic parameter construction + example run
# ---------------------------------------------------------------------------
def make_params(key, input_action_size, output_action_size, E, H, F):
    ks = jax.random.split(key, 16)
    s = 0.05

    def rn(k, shape):
        return jax.random.normal(k, shape, dtype=jnp.float32) * s

    return {
        "embedding": rn(ks[0], (input_action_size, E)),
        "w_ih": rn(ks[1], (4 * H, E + F)),
        "w_hh": rn(ks[2], (4 * H, H)),
        "b_ih": rn(ks[3], (4 * H,)),
        "b_hh": rn(ks[4], (4 * H,)),
        "B_w": rn(ks[5], (H, H)),
        "B_b": rn(ks[6], (H,)),
        "a1_in": rn(ks[7], (H, H)),
        "a1_out": rn(ks[8], (H, 2 * H)),
        "a2_in": rn(ks[9], (H, H)),
        "a2_out": rn(ks[10], (H, 2 * H)),
        "memA": rn(ks[11], (H, E + F)),
        "memC": rn(ks[12], (H, E + F)),
        "dec_w": rn(ks[13], (output_action_size, 2 * H)),
        "dec_b": rn(ks[14], (output_action_size,)),
    }


if __name__ == "__main__":
    B = 2                     # batch
    input_action_size = 10
    output_action_size = 6
    E = 32                    # embedding_size
    H = 32                    # hidden_size
    F = 64                    # feature_size (small synthetic stand-in for 2048)
    S = 8                     # ctx seq_len
    M = 20                    # FIFO memory slots (matches FIFOMemoryN2N(..., 20))

    key = jax.random.PRNGKey(0)
    kp, k1, k2, k3, k4, k5 = jax.random.split(key, 6)

    raw_params = make_params(kp, input_action_size, output_action_size, E, H, F)
    # one-time layout / dtype prep (hoisted out of the decode step)
    prepped = prepare_decoder_params(raw_params)

    action = jax.random.randint(k1, (B, 1), 0, input_action_size, dtype=jnp.int32)
    feature = jax.random.normal(k2, (B, F), dtype=jnp.float32)
    h_0 = jax.random.normal(k3, (B, H), dtype=jnp.float32) * 0.1
    c_0 = jax.random.normal(k4, (B, H), dtype=jnp.float32) * 0.1
    ctx = jax.random.normal(k5, (B, S, H), dtype=jnp.float32) * 0.1
    memory = jnp.zeros((B, M, E + F), dtype=jnp.float32)
    # mask out the last two context positions for each batch element
    ctx_mask = jnp.zeros((B, S), dtype=jnp.float32).at[:, S - 2:].set(1.0)

    h1, c1, new_memory, alpha, logit = decoder_hist_n2n_attn_forward(
        prepped, action, feature, h_0, c_0, ctx, memory, ctx_mask
    )
    jax.block_until_ready((h1, c1, new_memory, alpha, logit))

    assert h1.shape == (B, H) and c1.shape == (B, H)
    assert new_memory.shape == (B, M, E + F)
    assert alpha.shape == (B, S) and logit.shape == (B, output_action_size)
    assert bool(jnp.isfinite(h1).all() & jnp.isfinite(c1).all()
                & jnp.isfinite(alpha).all() & jnp.isfinite(logit).all())
    # softmax attention rows sum to 1 and masked positions carry ~zero weight
    assert bool(jnp.allclose(alpha.sum(axis=1), 1.0, atol=1e-3))
    assert float(alpha[:, S - 2:].max()) < 1e-6
    print("KERNEL_OK")
</pallas_src>

<mosaic_0001>
module attributes {stable_mosaic.version = 11 : i64} {
  func.func @decoder_step_kernel(%arg0: memref<2x128xbf16, #tpu.memory_space<vmem>>, %arg1: memref<2x32xf32, #tpu.memory_space<vmem>>, %arg2: memref<2x8x32xbf16, #tpu.memory_space<vmem>>, %arg3: memref<2x1x8xf32, #tpu.memory_space<vmem>>, %arg4: memref<2x20x96xbf16, #tpu.memory_space<vmem>>, %arg5: memref<128x128xbf16, #tpu.memory_space<vmem>>, %arg6: memref<1x128xf32, #tpu.memory_space<vmem>>, %arg7: memref<32x32xbf16, #tpu.memory_space<vmem>>, %arg8: memref<1x32xf32, #tpu.memory_space<vmem>>, %arg9: memref<32x32xbf16, #tpu.memory_space<vmem>>, %arg10: memref<64x32xbf16, #tpu.memory_space<vmem>>, %arg11: memref<32x32xbf16, #tpu.memory_space<vmem>>, %arg12: memref<64x32xbf16, #tpu.memory_space<vmem>>, %arg13: memref<32x96xbf16, #tpu.memory_space<vmem>>, %arg14: memref<96x32xbf16, #tpu.memory_space<vmem>>, %arg15: memref<64x6xbf16, #tpu.memory_space<vmem>>, %arg16: memref<1x6xf32, #tpu.memory_space<vmem>>, %arg17: memref<2x128xf32, #tpu.memory_space<vmem>>) attributes {dimension_semantics = [], scalar_prefetch = 0 : i64, scratch_operands = 0 : i64, tpu.core_type = #tpu.core_type<tc>} {
    %c0 = arith.constant 0 : index
    %c0_0 = arith.constant 0 : index
    %0 = vector.load %arg0[%c0, %c0_0] : memref<2x128xbf16, #tpu.memory_space<vmem>>, vector<2x128xbf16>
    %c0_1 = arith.constant 0 : index
    %c0_2 = arith.constant 0 : index
    %1 = vector.load %arg5[%c0_1, %c0_2] : memref<128x128xbf16, #tpu.memory_space<vmem>>, vector<128x128xbf16>
    %cst = arith.constant dense<0.000000e+00> : vector<2x128xf32>
    %2 = tpu.matmul %0, %1, %cst {dimension_numbers = #tpu.dot_dimension_numbers<[1], [0], [0], [1], [0, 0, 1, 1], [], []>} : vector<2x128xbf16>, vector<128x128xbf16>, vector<2x128xf32> -> vector<2x128xf32>
    %c0_3 = arith.constant 0 : index
    %c0_4 = arith.constant 0 : index
    %3 = vector.load %arg6[%c0_3, %c0_4] : memref<1x128xf32, #tpu.memory_space<vmem>>, vector<1x128xf32>
    %4 = vector.broadcast %3 : vector<1x128xf32> to vector<2x128xf32>
    %5 = arith.addf %2, %4 : vector<2x128xf32>
    %6 = vector.extract_strided_slice %5 {offsets = [0, 0], sizes = [2, 32], strides = [1, 1]} : vector<2x128xf32> to vector<2x32xf32>
    %7 = arith.negf %6 : vector<2x32xf32>
    %8 = math.exp %7 : vector<2x32xf32>
    %cst_5 = arith.constant 1.000000e+00 : f32
    %9 = vector.broadcast %cst_5 : f32 to vector<2x32xf32>
    %10 = arith.addf %9, %8 : vector<2x32xf32>
    %11 = arith.divf %9, %10 : vector<2x32xf32>
    %12 = vector.extract_strided_slice %5 {offsets = [0, 32], sizes = [2, 32], strides = [1, 1]} : vector<2x128xf32> to vector<2x32xf32>
    %13 = arith.negf %12 : vector<2x32xf32>
    %14 = math.exp %13 : vector<2x32xf32>
    %cst_6 = arith.constant 1.000000e+00 : f32
    %15 = vector.broadcast %cst_6 : f32 to vector<2x32xf32>
    %16 = arith.addf %15, %14 : vector<2x32xf32>
    %17 = arith.divf %15, %16 : vector<2x32xf32>
    %18 = vector.extract_strided_slice %5 {offsets = [0, 64], sizes = [2, 32], strides = [1, 1]} : vector<2x128xf32> to vector<2x32xf32>
    %19 = math.tanh %18 : vector<2x32xf32>
    %20 = vector.extract_strided_slice %5 {offsets = [0, 96], sizes = [2, 32], strides = [1, 1]} : vector<2x128xf32> to vector<2x32xf32>
    %21 = arith.negf %20 : vector<2x32xf32>
    %22 = math.exp %21 : vector<2x32xf32>
    %cst_7 = arith.constant 1.000000e+00 : f32
    %23 = vector.broadcast %cst_7 : f32 to vector<2x32xf32>
    %24 = arith.addf %23, %22 : vector<2x32xf32>
    %25 = arith.divf %23, %24 : vector<2x32xf32>
    %c0_8 = arith.constant 0 : index
    %c0_9 = arith.constant 0 : index
    %26 = vector.load %arg1[%c0_8, %c0_9] : memref<2x32xf32, #tpu.memory_space<vmem>>, vector<2x32xf32>
    %27 = arith.mulf %17, %26 : vector<2x32xf32>
    %28 = arith.mulf %11, %19 : vector<2x32xf32>
    %29 = arith.addf %27, %28 : vector<2x32xf32>
    %30 = math.tanh %29 : vector<2x32xf32>
    %31 = arith.mulf %25, %30 : vector<2x32xf32>
    %32 = arith.truncf %31 : vector<2x32xf32> to vector<2x32xbf16>
    %c0_10 = arith.constant 0 : index
    %c0_11 = arith.constant 0 : index
    %33 = vector.load %arg7[%c0_10, %c0_11] : memref<32x32xbf16, #tpu.memory_space<vmem>>, vector<32x32xbf16>
    %cst_12 = arith.constant dense<0.000000e+00> : vector<2x32xf32>
    %34 = tpu.matmul %32, %33, %cst_12 {dimension_numbers = #tpu.dot_dimension_numbers<[1], [0], [0], [1], [0, 0, 1, 1], [], []>} : vector<2x32xbf16>, vector<32x32xbf16>, vector<2x32xf32> -> vector<2x32xf32>
    %c0_13 = arith.constant 0 : index
    %c0_14 = arith.constant 0 : index
    %35 = vector.load %arg8[%c0_13, %c0_14] : memref<1x32xf32, #tpu.memory_space<vmem>>, vector<1x32xf32>
    %36 = vector.broadcast %35 : vector<1x32xf32> to vector<2x32xf32>
    %37 = arith.addf %34, %36 : vector<2x32xf32>
    %38 = arith.truncf %37 : vector<2x32xf32> to vector<2x32xbf16>
    %c0_15 = arith.constant 0 : index
    %c0_16 = arith.constant 0 : index
    %c0_17 = arith.constant 0 : index
    %39 = vector.load %arg4[%c0_15, %c0_16, %c0_17] : memref<2x20x96xbf16, #tpu.memory_space<vmem>>, vector<2x20x96xbf16>
    %c0_18 = arith.constant 0 : index
    %c0_19 = arith.constant 0 : index
    %40 = vector.load %arg13[%c0_18, %c0_19] : memref<32x96xbf16, #tpu.memory_space<vmem>>, vector<32x96xbf16>
    %cst_20 = arith.constant dense<0.000000e+00> : vector<2x96xf32>
    %41 = tpu.matmul %38, %40, %cst_20 {dimension_numbers = #tpu.dot_dimension_numbers<[1], [0], [0], [1], [0, 0, 1, 1], [], []>} : vector<2x32xbf16>, vector<32x96xbf16>, vector<2x96xf32> -> vector<2x96xf32>
    %42 = arith.truncf %41 : vector<2x96xf32> to vector<2x96xbf16>
    %43 = vector.shape_cast %42 : vector<2x96xbf16> to vector<2x1x96xbf16>
    "tpu.trace_start"() <{level = 10 : i32, message = "bqf,bmf->bqm"}> : () -> ()
    %cst_21 = arith.constant dense<0.000000e+00> : vector<2x1x20xf32>
    %44 = tpu.matmul %43, %39, %cst_21 {dimension_numbers = #tpu.dot_dimension_numbers<[2], [2], [1], [1], [0, 0, 0, 1, 1, 1], [0], [0]>} : vector<2x1x96xbf16>, vector<2x20x96xbf16>, vector<2x1x20xf32> -> vector<2x1x20xf32>
    "tpu.trace_stop"() : () -> ()
    %cst_22 = arith.constant dense<0xFF800000> : vector<2x1xf32>
    %45 = vector.multi_reduction <maximumf>, %44, %cst_22 [2] : vector<2x1x20xf32> to vector<2x1xf32>
    %cst_23 = arith.constant 0xFF800000 : f32
    %46 = vector.broadcast %cst_23 : f32 to vector<2x1xf32>
    %47 = arith.maximumf %46, %45 : vector<2x1xf32>
    %48 = vector.shape_cast %47 : vector<2x1xf32> to vector<2x1x1xf32>
    %49 = vector.broadcast %48 : vector<2x1x1xf32> to vector<2x1x20xf32>
    %50 = arith.subf %44, %49 : vector<2x1x20xf32>
    %51 = math.exp %50 : vector<2x1x20xf32>
    %cst_24 = arith.constant dense<0.000000e+00> : vector<2x1xf32>
    %52 = vector.multi_reduction <add>, %51, %cst_24 [2] : vector<2x1x20xf32> to vector<2x1xf32>
    %53 = vector.shape_cast %52 : vector<2x1xf32> to vector<2x1x1xf32>
    %54 = vector.broadcast %53 : vector<2x1x1xf32> to vector<2x1x20xf32>
    %55 = arith.divf %51, %54 : vector<2x1x20xf32>
    %56 = arith.truncf %55 : vector<2x1x20xf32> to vector<2x1x20xbf16>
    "tpu.trace_start"() <{level = 10 : i32, message = "bqm,bmf->bqf"}> : () -> ()
    %cst_25 = arith.constant dense<0.000000e+00> : vector<2x1x96xf32>
    %57 = tpu.matmul %56, %39, %cst_25 {dimension_numbers = #tpu.dot_dimension_numbers<[2], [1], [1], [2], [0, 0, 0, 1, 1, 2], [0], [0]>} : vector<2x1x20xbf16>, vector<2x20x96xbf16>, vector<2x1x96xf32> -> vector<2x1x96xf32>
    "tpu.trace_stop"() : () -> ()
    %58 = vector.shape_cast %57 : vector<2x1x96xf32> to vector<2x96xf32>
    %59 = arith.truncf %58 : vector<2x96xf32> to vector<2x96xbf16>
    %c0_26 = arith.constant 0 : index
    %c0_27 = arith.constant 0 : index
    %60 = vector.load %arg14[%c0_26, %c0_27] : memref<96x32xbf16, #tpu.memory_space<vmem>>, vector<96x32xbf16>
    %cst_28 = arith.constant dense<0.000000e+00> : vector<2x32xf32>
    %61 = tpu.matmul %59, %60, %cst_28 {dimension_numbers = #tpu.dot_dimension_numbers<[1], [0], [0], [1], [0, 0, 1, 1], [], []>} : vector<2x96xbf16>, vector<96x32xbf16>, vector<2x32xf32> -> vector<2x32xf32>
    %62 = arith.addf %61, %37 : vector<2x32xf32>
    %63 = arith.truncf %62 : vector<2x32xf32> to vector<2x32xbf16>
    %c0_29 = arith.constant 0 : index
    %c0_30 = arith.constant 0 : index
    %c0_31 = arith.constant 0 : index
    %64 = vector.load %arg2[%c0_29, %c0_30, %c0_31] : memref<2x8x32xbf16, #tpu.memory_space<vmem>>, vector<2x8x32xbf16>
    %c0_32 = arith.constant 0 : index
    %c0_33 = arith.constant 0 : index
    %c0_34 = arith.constant 0 : index
    %65 = vector.load %arg3[%c0_32, %c0_33, %c0_34] : memref<2x1x8xf32, #tpu.memory_space<vmem>>, vector<2x1x8xf32>
    %c0_35 = arith.constant 0 : index
    %c0_36 = arith.constant 0 : index
    %66 = vector.load %arg9[%c0_35, %c0_36] : memref<32x32xbf16, #tpu.memory_space<vmem>>, vector<32x32xbf16>
    %cst_37 = arith.constant dense<0.000000e+00> : vector<2x32xf32>
    %67 = tpu.matmul %32, %66, %cst_37 {dimension_numbers = #tpu.dot_dimension_numbers<[1], [0], [0], [1], [0, 0, 1, 1], [], []>} : vector<2x32xbf16>, vector<32x32xbf16>, vector<2x32xf32> -> vector<2x32xf32>
    %68 = arith.truncf %67 : vector<2x32xf32> to vector<2x32xbf16>
    %69 = vector.shape_cast %68 : vector<2x32xbf16> to vector<2x1x32xbf16>
    "tpu.trace_start"() <{level = 10 : i32, message = "bqd,bkd->bqk"}> : () -> ()
    %cst_38 = arith.constant dense<0.000000e+00> : vector<2x1x8xf32>
    %70 = tpu.matmul %69, %64, %cst_38 {dimension_numbers = #tpu.dot_dimension_numbers<[2], [2], [1], [1], [0, 0, 0, 1, 1, 1], [0], [0]>} : vector<2x1x32xbf16>, vector<2x8x32xbf16>, vector<2x1x8xf32> -> vector<2x1x8xf32>
    %cst_39 = arith.constant 5.000000e-01 : f32
    "tpu.trace_stop"() : () -> ()
    %71 = vector.broadcast %cst_39 : f32 to vector<2x1x8xf32>
    %72 = arith.cmpf ogt, %65, %71 : vector<2x1x8xf32>
    %cst_40 = arith.constant -1.000000e+30 : f32
    %73 = vector.broadcast %cst_40 : f32 to vector<2x1x8xf32>
    %74 = arith.select %72, %73, %70 : vector<2x1x8xi1>, vector<2x1x8xf32>
    %cst_41 = arith.constant dense<0xFF800000> : vector<2x1xf32>
    %75 = vector.multi_reduction <maximumf>, %74, %cst_41 [2] : vector<2x1x8xf32> to vector<2x1xf32>
    %cst_42 = arith.constant 0xFF800000 : f32
    %76 = vector.broadcast %cst_42 : f32 to vector<2x1xf32>
    %77 = arith.maximumf %76, %75 : vector<2x1xf32>
    %78 = vector.shape_cast %77 : vector<2x1xf32> to vector<2x1x1xf32>
    %79 = vector.broadcast %78 : vector<2x1x1xf32> to vector<2x1x8xf32>
    %80 = arith.subf %74, %79 : vector<2x1x8xf32>
    %81 = math.exp %80 : vector<2x1x8xf32>
    %cst_43 = arith.constant dense<0.000000e+00> : vector<2x1xf32>
    %82 = vector.multi_reduction <add>, %81, %cst_43 [2] : vector<2x1x8xf32> to vector<2x1xf32>
    %83 = vector.shape_cast %82 : vector<2x1xf32> to vector<2x1x1xf32>
    %84 = vector.broadcast %83 : vector<2x1x1xf32> to vector<2x1x8xf32>
    %85 = arith.divf %81, %84 : vector<2x1x8xf32>
    %86 = arith.truncf %85 : vector<2x1x8xf32> to vector<2x1x8xbf16>
    "tpu.trace_start"() <{level = 10 : i32, message = "bqk,bkd->bqd"}> : () -> ()
    %cst_44 = arith.constant dense<0.000000e+00> : vector<2x1x32xf32>
    %87 = tpu.matmul %86, %64, %cst_44 {dimension_numbers = #tpu.dot_dimension_numbers<[2], [1], [1], [2], [0, 0, 0, 1, 1, 2], [0], [0]>} : vector<2x1x8xbf16>, vector<2x8x32xbf16>, vector<2x1x32xf32> -> vector<2x1x32xf32>
    "tpu.trace_stop"() : () -> ()
    %88 = vector.shape_cast %87 : vector<2x1x32xf32> to vector<2x32xf32>
    %89 = tpu.concatenate %88, %31 in 1 : vector<2x32xf32>, vector<2x32xf32> -> vector<2x64xf32>
    %90 = arith.truncf %89 : vector<2x64xf32> to vector<2x64xbf16>
    %c0_45 = arith.constant 0 : index
    %c0_46 = arith.constant 0 : index
    %91 = vector.load %arg10[%c0_45, %c0_46] : memref<64x32xbf16, #tpu.memory_space<vmem>>, vector<64x32xbf16>
    %cst_47 = arith.constant dense<0.000000e+00> : vector<2x32xf32>
    %92 = tpu.matmul %90, %91, %cst_47 {dimension_numbers = #tpu.dot_dimension_numbers<[1], [0], [0], [1], [0, 0, 1, 1], [], []>} : vector<2x64xbf16>, vector<64x32xbf16>, vector<2x32xf32> -> vector<2x32xf32>
    %93 = math.tanh %92 : vector<2x32xf32>
    %94 = vector.shape_cast %85 : vector<2x1x8xf32> to vector<2x8xf32>
    %c0_48 = arith.constant 0 : index
    %c0_49 = arith.constant 0 : index
    %95 = vector.load %arg11[%c0_48, %c0_49] : memref<32x32xbf16, #tpu.memory_space<vmem>>, vector<32x32xbf16>
    %cst_50 = arith.constant dense<0.000000e+00> : vector<2x32xf32>
    %96 = tpu.matmul %63, %95, %cst_50 {dimension_numbers = #tpu.dot_dimension_numbers<[1], [0], [0], [1], [0, 0, 1, 1], [], []>} : vector<2x32xbf16>, vector<32x32xbf16>, vector<2x32xf32> -> vector<2x32xf32>
    %97 = arith.truncf %96 : vector<2x32xf32> to vector<2x32xbf16>
    %98 = vector.shape_cast %97 : vector<2x32xbf16> to vector<2x1x32xbf16>
    "tpu.trace_start"() <{level = 10 : i32, message = "bqd,bkd->bqk"}> : () -> ()
    %cst_51 = arith.constant dense<0.000000e+00> : vector<2x1x8xf32>
    %99 = tpu.matmul %98, %64, %cst_51 {dimension_numbers = #tpu.dot_dimension_numbers<[2], [2], [1], [1], [0, 0, 0, 1, 1, 1], [0], [0]>} : vector<2x1x32xbf16>, vector<2x8x32xbf16>, vector<2x1x8xf32> -> vector<2x1x8xf32>
    %cst_52 = arith.constant 5.000000e-01 : f32
    "tpu.trace_stop"() : () -> ()
    %100 = vector.broadcast %cst_52 : f32 to vector<2x1x8xf32>
    %101 = arith.cmpf ogt, %65, %100 : vector<2x1x8xf32>
    %cst_53 = arith.constant -1.000000e+30 : f32
    %102 = vector.broadcast %cst_53 : f32 to vector<2x1x8xf32>
    %103 = arith.select %101, %102, %99 : vector<2x1x8xi1>, vector<2x1x8xf32>
    %cst_54 = arith.constant dense<0xFF800000> : vector<2x1xf32>
    %104 = vector.multi_reduction <maximumf>, %103, %cst_54 [2] : vector<2x1x8xf32> to vector<2x1xf32>
    %cst_55 = arith.constant 0xFF800000 : f32
    %105 = vector.broadcast %cst_55 : f32 to vector<2x1xf32>
    %106 = arith.maximumf %105, %104 : vector<2x1xf32>
    %107 = vector.shape_cast %106 : vector<2x1xf32> to vector<2x1x1xf32>
    %108 = vector.broadcast %107 : vector<2x1x1xf32> to vector<2x1x8xf32>
    %109 = arith.subf %103, %108 : vector<2x1x8xf32>
    %110 = math.exp %109 : vector<2x1x8xf32>
    %cst_56 = arith.constant dense<0.000000e+00> : vector<2x1xf32>
    %111 = vector.multi_reduction <add>, %110, %cst_56 [2] : vector<2x1x8xf32> to vector<2x1xf32>
    %112 = vector.shape_cast %111 : vector<2x1xf32> to vector<2x1x1xf32>
    %113 = vector.broadcast %112 : vector<2x1x1xf32> to vector<2x1x8xf32>
    %114 = arith.divf %110, %113 : vector<2x1x8xf32>
    %115 = arith.truncf %114 : vector<2x1x8xf32> to vector<2x1x8xbf16>
    "tpu.trace_start"() <{level = 10 : i32, message = "bqk,bkd->bqd"}> : () -> ()
    %cst_57 = arith.constant dense<0.000000e+00> : vector<2x1x32xf32>
    %116 = tpu.matmul %115, %64, %cst_57 {dimension_numbers = #tpu.dot_dimension_numbers<[2], [1], [1], [2], [0, 0, 0, 1, 1, 2], [0], [0]>} : vector<2x1x8xbf16>, vector<2x8x32xbf16>, vector<2x1x32xf32> -> vector<2x1x32xf32>
    "tpu.trace_stop"() : () -> ()
    %117 = vector.shape_cast %116 : vector<2x1x32xf32> to vector<2x32xf32>
    %118 = tpu.concatenate %117, %62 in 1 : vector<2x32xf32>, vector<2x32xf32> -> vector<2x64xf32>
    %119 = arith.truncf %118 : vector<2x64xf32> to vector<2x64xbf16>
    %c0_58 = arith.constant 0 : index
    %c0_59 = arith.constant 0 : index
    %120 = vector.load %arg12[%c0_58, %c0_59] : memref<64x32xbf16, #tpu.memory_space<vmem>>, vector<64x32xbf16>
    %cst_60 = arith.constant dense<0.000000e+00> : vector<2x32xf32>
    %121 = tpu.matmul %119, %120, %cst_60 {dimension_numbers = #tpu.dot_dimension_numbers<[1], [0], [0], [1], [0, 0, 1, 1], [], []>} : vector<2x64xbf16>, vector<64x32xbf16>, vector<2x32xf32> -> vector<2x32xf32>
    %122 = math.tanh %121 : vector<2x32xf32>
    %123 = tpu.concatenate %93, %122 in 1 : vector<2x32xf32>, vector<2x32xf32> -> vector<2x64xf32>
    %124 = arith.truncf %123 : vector<2x64xf32> to vector<2x64xbf16>
    %c0_61 = arith.constant 0 : index
    %c0_62 = arith.constant 0 : index
    %125 = vector.load %arg15[%c0_61, %c0_62] : memref<64x6xbf16, #tpu.memory_space<vmem>>, vector<64x6xbf16>
    %cst_63 = arith.constant dense<0.000000e+00> : vector<2x6xf32>
    %126 = tpu.matmul %124, %125, %cst_63 {dimension_numbers = #tpu.dot_dimension_numbers<[1], [0], [0], [1], [0, 0, 1, 1], [], []>} : vector<2x64xbf16>, vector<64x6xbf16>, vector<2x6xf32> -> vector<2x6xf32>
    %c0_64 = arith.constant 0 : index
    %c0_65 = arith.constant 0 : index
    %127 = vector.load %arg16[%c0_64, %c0_65] : memref<1x6xf32, #tpu.memory_space<vmem>>, vector<1x6xf32>
    %128 = vector.broadcast %127 : vector<1x6xf32> to vector<2x6xf32>
    %129 = arith.addf %126, %128 : vector<2x6xf32>
    %c0_66 = arith.constant 0 : index
    %c0_67 = arith.constant 0 : index
    %130 = vector.load %arg17[%c0_66, %c0_67] : memref<2x128xf32, #tpu.memory_space<vmem>>, vector<2x32xf32>
    tpu.vector_store %arg17[%c0_66, %c0_67], %31 {strides = array<i32>} : memref<2x128xf32, #tpu.memory_space<vmem>>, vector<2x32xf32>,
    %c0_68 = arith.constant 0 : index
    %c32 = arith.constant 32 : index
    %131 = vector.load %arg17[%c0_68, %c32] : memref<2x128xf32, #tpu.memory_space<vmem>>, vector<2x32xf32>
    tpu.vector_store %arg17[%c0_68, %c32], %29 {strides = array<i32>} : memref<2x128xf32, #tpu.memory_space<vmem>>, vector<2x32xf32>,
    %c0_69 = arith.constant 0 : index
    %c64 = arith.constant 64 : index
    %132 = vector.load %arg17[%c0_69, %c64] : memref<2x128xf32, #tpu.memory_space<vmem>>, vector<2x8xf32>
    tpu.vector_store %arg17[%c0_69, %c64], %94 {strides = array<i32>} : memref<2x128xf32, #tpu.memory_space<vmem>>, vector<2x8xf32>,
    %c0_70 = arith.constant 0 : index
    %c72 = arith.constant 72 : index
    %133 = vector.load %arg17[%c0_70, %c72] : memref<2x128xf32, #tpu.memory_space<vmem>>, vector<2x6xf32>
    tpu.vector_store %arg17[%c0_70, %c72], %129 {strides = array<i32>} : memref<2x128xf32, #tpu.memory_space<vmem>>, vector<2x6xf32>,
    %cst_71 = arith.constant 0.000000e+00 : f32
    %134 = vector.broadcast %cst_71 : f32 to vector<2x50xf32>
    %c0_72 = arith.constant 0 : index
    %c78 = arith.constant 78 : index
    %135 = vector.load %arg17[%c0_72, %c78] : memref<2x128xf32, #tpu.memory_space<vmem>>, vector<2x50xf32>
    tpu.vector_store %arg17[%c0_72, %c78], %134 {strides = array<i32>} : memref<2x128xf32, #tpu.memory_space<vmem>>, vector<2x50xf32>,
    return
  }
}

</mosaic_0001>

<llo_original>
// kernel: tpu_custom_call.1
$region0: #{tpu_custom_call.1}
  #allocation0 [shape = 'u32[]', space=smem, size = 0x4, offset = 0x4, fixed_abs, tag = 'smem constant byte address 0x4 - core index']
  #allocation1 [shape = 'u32[144,128]{1,0:T(1,128)}', space=vmem, size = 0x12000, scoped, tag = 'internal scratch']
  %s0 = inlined_call_operand.vmem [shape: bf16[2,128], index: 0, kind: input, shape index: {}]
  %s1 = inlined_call_operand.vmem [shape: f32[2,32], index: 1, kind: input, shape index: {}]
  %s2 = inlined_call_operand.vmem [shape: bf16[2,8,32], index: 2, kind: input, shape index: {}]
  %s3 = inlined_call_operand.vmem [shape: f32[2,1,8], index: 3, kind: input, shape index: {}]
  %s4 = inlined_call_operand.vmem [shape: bf16[2,20,96], index: 4, kind: input, shape index: {}]
  %s5 = inlined_call_operand.vmem [shape: bf16[128,128], index: 5, kind: input, shape index: {}]
  %s6 = inlined_call_operand.vmem [shape: f32[1,128], index: 6, kind: input, shape index: {}]
  %s7 = inlined_call_operand.vmem [shape: bf16[32,32], index: 7, kind: input, shape index: {}]
  %s8 = inlined_call_operand.vmem [shape: f32[1,32], index: 8, kind: input, shape index: {}]
  %s9 = inlined_call_operand.vmem [shape: bf16[32,32], index: 9, kind: input, shape index: {}]
  %s10 = inlined_call_operand.vmem [shape: bf16[64,32], index: 10, kind: input, shape index: {}]
  %s11 = inlined_call_operand.vmem [shape: bf16[32,32], index: 11, kind: input, shape index: {}]
  %s12 = inlined_call_operand.vmem [shape: bf16[64,32], index: 12, kind: input, shape index: {}]
  %s13 = inlined_call_operand.vmem [shape: bf16[32,96], index: 13, kind: input, shape index: {}]
  %s14 = inlined_call_operand.vmem [shape: bf16[96,32], index: 14, kind: input, shape index: {}]
  %s15 = inlined_call_operand.vmem [shape: bf16[64,6], index: 15, kind: input, shape index: {}]
  %s16 = inlined_call_operand.vmem [shape: f32[1,6], index: 16, kind: input, shape index: {}]
  %s17 = inlined_call_operand.hbm [shape: f32[2,128], index: 17, kind: output, shape index: {}]
  %s18 = sld [smem:[#allocation0]]
  $region78: #{tpu_custom_call.1} parent=0
    _
  %s20 = ssub.s32 1, %s18
  %s21 = scalar_select 0, %s20, %s18
  $region1: #{tpu_custom_call.1} parent=0
    #allocation2 [shape = 'u8[1024]{0}', space=vmem, size = 0x400, scoped, tag = 'output window, operand 0, single buffered']
    #allocation3 [shape = 's32[1]{0}', space=sflag, size = 0x4, scoped, tag = 'scoped memory for tpu_custom_call.1']
    %22 = vsyncpa [#allocation3], 0
    // Predicated region
    $region2: #{tpu_custom_call.1} parent=1 // pred_check
      _
    $region3: #{tpu_custom_call.1} parent=1 // pred_check_branch
      %24 = sbr.rel (0) target = $region5
    $region4: #{tpu_custom_call.1} parent=1 // pred_region
      _
    $region5: #{tpu_custom_call.1} parent=1 // pred_fallthru
      _
    // Predicated region
    $region6: #{tpu_custom_call.1} parent=1 // pred_check
      _
    $region7: #{tpu_custom_call.1} parent=1 // pred_check_branch
      %26 = sbr.rel (0) target = $region9
    $region8: #{tpu_custom_call.1} parent=1 // pred_region
      _
    $region9: #{tpu_custom_call.1} parent=1 // pred_fallthru
      _
    // Predicated region
    $region10: #{tpu_custom_call.1} parent=1 // pred_check
      _
    $region11: #{tpu_custom_call.1} parent=1 // pred_check_branch
      %28 = sbr.rel (0) target = $region13
    $region12: #{tpu_custom_call.1} parent=1 // pred_region
      _
    $region13: #{tpu_custom_call.1} parent=1 // pred_fallthru
      _
    // Predicated region
    $region14: #{tpu_custom_call.1} parent=1 // pred_check
      _
    $region15: #{tpu_custom_call.1} parent=1 // pred_check_branch
      %30 = sbr.rel (0) target = $region17
    $region16: #{tpu_custom_call.1} parent=1 // pred_region
      _
    $region17: #{tpu_custom_call.1} parent=1 // pred_fallthru
      _
    // Predicated region
    $region18: #{tpu_custom_call.1} parent=1 // pred_check
      _
    $region19: #{tpu_custom_call.1} parent=1 // pred_check_branch
      %32 = sbr.rel (0) target = $region21
    $region20: #{tpu_custom_call.1} parent=1 // pred_region
      _
    $region21: #{tpu_custom_call.1} parent=1 // pred_fallthru
      _
    // Predicated region
    $region22: #{tpu_custom_call.1} parent=1 // pred_check
      _
    $region23: #{tpu_custom_call.1} parent=1 // pred_check_branch
      %34 = sbr.rel (0) target = $region25
    $region24: #{tpu_custom_call.1} parent=1 // pred_region
      _
    $region25: #{tpu_custom_call.1} parent=1 // pred_fallthru
      _
    // Predicated region
    $region26: #{tpu_custom_call.1} parent=1 // pred_check
      _
    $region27: #{tpu_custom_call.1} parent=1 // pred_check_branch
      %36 = sbr.rel (0) target = $region29
    $region28: #{tpu_custom_call.1} parent=1 // pred_region
      _
    $region29: #{tpu_custom_call.1} parent=1 // pred_fallthru
      _
    // Predicated region
    $region30: #{tpu_custom_call.1} parent=1 // pred_check
      _
    $region31: #{tpu_custom_call.1} parent=1 // pred_check_branch
      %38 = sbr.rel (0) target = $region33
    $region32: #{tpu_custom_call.1} parent=1 // pred_region
      _
    $region33: #{tpu_custom_call.1} parent=1 // pred_fallthru
      _
    // Predicated region
    $region34: #{tpu_custom_call.1} parent=1 // pred_check
      _
    $region35: #{tpu_custom_call.1} parent=1 // pred_check_branch
      %40 = sbr.rel (0) target = $region37
    $region36: #{tpu_custom_call.1} parent=1 // pred_region
      _
    $region37: #{tpu_custom_call.1} parent=1 // pred_fallthru
      _
    // Predicated region
    $region38: #{tpu_custom_call.1} parent=1 // pred_check
      _
    $region39: #{tpu_custom_call.1} parent=1 // pred_check_branch
      %42 = sbr.rel (0) target = $region41
    $region40: #{tpu_custom_call.1} parent=1 // pred_region
      _
    $region41: #{tpu_custom_call.1} parent=1 // pred_fallthru
      _
    // Predicated region
    $region42: #{tpu_custom_call.1} parent=1 // pred_check
      _
    $region43: #{tpu_custom_call.1} parent=1 // pred_check_branch
      %44 = sbr.rel (0) target = $region45
    $region44: #{tpu_custom_call.1} parent=1 // pred_region
      _
    $region45: #{tpu_custom_call.1} parent=1 // pred_fallthru
      _
    // Predicated region
    $region46: #{tpu_custom_call.1} parent=1 // pred_check
      _
    $region47: #{tpu_custom_call.1} parent=1 // pred_check_branch
      %46 = sbr.rel (0) target = $region49
    $region48: #{tpu_custom_call.1} parent=1 // pred_region
      _
    $region49: #{tpu_custom_call.1} parent=1 // pred_fallthru
      _
    // Predicated region
    $region50: #{tpu_custom_call.1} parent=1 // pred_check
      _
    $region51: #{tpu_custom_call.1} parent=1 // pred_check_branch
      %48 = sbr.rel (0) target = $region53
    $region52: #{tpu_custom_call.1} parent=1 // pred_region
      _
    $region53: #{tpu_custom_call.1} parent=1 // pred_fallthru
      _
    // Predicated region
    $region54: #{tpu_custom_call.1} parent=1 // pred_check
      _
    $region55: #{tpu_custom_call.1} parent=1 // pred_check_branch
      %50 = sbr.rel (0) target = $region57
    $region56: #{tpu_custom_call.1} parent=1 // pred_region
      _
    $region57: #{tpu_custom_call.1} parent=1 // pred_fallthru
      _
    // Predicated region
    $region58: #{tpu_custom_call.1} parent=1 // pred_check
      _
    $region59: #{tpu_custom_call.1} parent=1 // pred_check_branch
      %52 = sbr.rel (0) target = $region61
    $region60: #{tpu_custom_call.1} parent=1 // pred_region
      _
    $region61: #{tpu_custom_call.1} parent=1 // pred_fallthru
      _
    // Predicated region
    $region62: #{tpu_custom_call.1} parent=1 // pred_check
      _
    $region63: #{tpu_custom_call.1} parent=1 // pred_check_branch
      %54 = sbr.rel (0) target = $region65
    $region64: #{tpu_custom_call.1} parent=1 // pred_region
      _
    $region65: #{tpu_custom_call.1} parent=1 // pred_fallthru
      _
    // Predicated region
    $region66: #{tpu_custom_call.1} parent=1 // pred_check
      _
    $region67: #{tpu_custom_call.1} parent=1 // pred_check_branch
      %56 = sbr.rel (0) target = $region69
    $region68: #{tpu_custom_call.1} parent=1 // pred_region
      _
    $region69: #{tpu_custom_call.1} parent=1 // pred_fallthru
      _
    %v58 = vld [vmem:[%s0] sm:$0x1]
    %v59 = vld [vmem:[%s5] sm:$0xf]
    %v60 = vld [vmem:[%s5 + $0x4] sm:$0xf]
    %v61 = vld [vmem:[%s5 + $0x8] sm:$0xf]
    %v62 = vld [vmem:[%s5 + $0xc] sm:$0xf]
    %v63 = vld [vmem:[%s5 + $0x10] sm:$0xf]
    %v64 = vld [vmem:[%s5 + $0x14] sm:$0xf]
    %v65 = vld [vmem:[%s5 + $0x18] sm:$0xf]
    %v66 = vld [vmem:[%s5 + $0x1c] sm:$0xf]
    %v67 = vld [vmem:[%s5 + $0x20] sm:$0xf]
    %v68 = vld [vmem:[%s5 + $0x24] sm:$0xf]
    %v69 = vld [vmem:[%s5 + $0x28] sm:$0xf]
    %v70 = vld [vmem:[%s5 + $0x2c] sm:$0xf]
    %v71 = vld [vmem:[%s5 + $0x30] sm:$0xf]
    %v72 = vld [vmem:[%s5 + $0x34] sm:$0xf]
    %v73 = vld [vmem:[%s5 + $0x38] sm:$0xf]
    %v74 = vld [vmem:[%s5 + $0x3c] sm:$0xf]
    %v75 = vld [vmem:[%s6] sm:$0x1]
    %v77 = vlaneseq
    %v78 = vshrl.u32 %v77, 7
    %v79 = vsub.s32 0, %v78
    %v80 = vrot.slane %v75, %v79
    %v98 = vunpack.c.l.b16 %v59
    %v99 = vunpack.c.l.b16 %v60
    %v100 = vunpack.c.l.b16 %v61
    %v101 = vunpack.c.l.b16 %v62
    %v102 = vunpack.c.l.b16 %v63
    %v103 = vunpack.c.l.b16 %v64
    %v104 = vunpack.c.l.b16 %v65
    %v105 = vunpack.c.l.b16 %v66
    %v106 = vunpack.c.l.b16 %v67
    %v107 = vunpack.c.l.b16 %v68
    %v108 = vunpack.c.l.b16 %v69
    %v109 = vunpack.c.l.b16 %v70
    %v110 = vunpack.c.l.b16 %v71
    %v111 = vunpack.c.l.b16 %v72
    %v112 = vunpack.c.l.b16 %v73
    %v113 = vunpack.c.l.b16 %v74
    %v114 = vpack.c.b16 %v99, %v98
    %v115 = vpack.c.b16 %v101, %v100
    %v116 = vpack.c.b16 %v103, %v102
    %v117 = vpack.c.b16 %v105, %v104
    %v118 = vpack.c.b16 %v107, %v106
    %v119 = vpack.c.b16 %v109, %v108
    %v120 = vpack.c.b16 %v111, %v110
    %v121 = vpack.c.b16 %v113, %v112
    %130 = vmatprep.subr.bf16.mxu0 0
    %131 = vmatpush1.bf16.msra.mxu0 %v114
    %132 = vmatprep.subr.bf16.mxu0 0
    %133 = vmatpush1.bf16.msra.mxu0 %v115
    %134 = vmatprep.subr.bf16.mxu0 0
    %135 = vmatpush1.bf16.msra.mxu0 %v116
    %136 = vmatprep.subr.bf16.mxu0 0
    %137 = vmatpush1.bf16.msra.mxu0 %v117
    %138 = vmatprep.subr.bf16.mxu0 0
    %139 = vmatpush1.bf16.msra.mxu0 %v118
    %140 = vmatprep.subr.bf16.mxu0 0
    %141 = vmatpush1.bf16.msra.mxu0 %v119
    %142 = vmatprep.subr.bf16.mxu0 0
    %143 = vmatpush1.bf16.msra.mxu0 %v120
    %144 = vmatprep.subr.bf16.mxu0 0
    %145 = vmatpush1.bf16.msra.mxu0 %v121
    %146 = vmatprep.subr.bf16.mxu0 0
    %147 = vmatpush1.bf16.msra.mxu0 0
    %148 = vmatprep.subr.bf16.mxu0 0
    %149 = vmatpush1.bf16.msra.mxu0 0
    %150 = vmatprep.subr.bf16.mxu0 0
    %151 = vmatpush1.bf16.msra.mxu0 0
    %152 = vmatprep.subr.bf16.mxu0 0
    %153 = vmatpush1.bf16.msra.mxu0 0
    %154 = vmatprep.subr.bf16.mxu0 0
    %155 = vmatpush1.bf16.msra.mxu0 0
    %156 = vmatprep.subr.bf16.mxu0 0
    %157 = vmatpush1.bf16.msra.mxu0 0
    %158 = vmatprep.subr.bf16.mxu0 0
    %159 = vmatpush1.bf16.msra.mxu0 0
    %160 = vmatprep.subr.bf16.mxu0 0
    %161 = vmatpush1.bf16.msra.mxu0 0
    %162 = vmatprep.mubr.bf16.mxu0 0
    %163 = vmatmul.mubr.bf16.gmra.mrb[0].mxu0 %v58
    %v164 = vpop.f32.mrb[0].mxu0
    %v165 = vadd.f32 %v80, %v164
    %v166 = vpop.f32.mrb[0].mxu0
    %v167 = vpop.f32.mrb[0].mxu0
    %v168 = vpop.f32.mrb[0].mxu0
    %169 = vdwg.mxu0
    %v170 = vxor.u32 %v165, 2147483648
    %v171 = vmul.f32 %v170, 1.442695
    %v172 = vpow.pop %v171
    %v173 = vadd.f32 %v172, 1.0
    %v174 = vrcp.pop %v173
    %v175 = vmul.f32 1.0, %v174
    %v176 = vtanh.pop %v165
    %v177 = vld [vmem:[%s1] sm:$0x3]
    %179 = vrot.lane.b32.xlu0 %v177, 32
    %v180 = vpop.permute.xlu0 %179
    %v182 = vmul.f32 %v175, %v180
    %184 = vrot.lane.b32.xlu0 %v176, 64
    %v185 = vpop.permute.xlu0 %184
    %v187 = vmul.f32 %v175, %v185
    %189 = vrot.lane.b32.xlu0 %v187, 32
    %v190 = vpop.permute.xlu0 %189
    %v192 = vadd.f32 %v182, %v190
    %v193 = vtanh.pop %v192
    %195 = vrot.lane.b32.xlu0 %v193, 64
    %v196 = vpop.permute.xlu0 %195
    %v198 = vmul.f32 %v175, %v196
    %v199 = vpack.c.bf16 %v198, %v198
    %v200 = vld [vmem:[%s7] sm:$0xf]
    %v201 = vld [vmem:[%s7 + $0x4] sm:$0xf]
    %v202 = vld [vmem:[%s7 + $0x8] sm:$0xf]
    %v203 = vld [vmem:[%s7 + $0xc] sm:$0xf]
    %v204 = vld [vmem:[%s8] sm:$0x1]
    %v206 = vlaneseq
    %v207 = vshrl.u32 %v206, 7
    %v208 = vsub.s32 0, %v207
    %v209 = vrot.slane %v204, %v208
    %212 = vrot.lane.b32.xlu0 %v199, 32
    %v213 = vpop.permute.xlu0 %212
    %v218 = vunpack.c.l.b16 %v200
    %v219 = vunpack.c.l.b16 %v201
    %v220 = vunpack.c.l.b16 %v202
    %v221 = vunpack.c.l.b16 %v203
    %v222 = vpack.c.b16 %v219, %v218
    %v223 = vpack.c.b16 %v221, %v220
    %vm226 = vcmask 261120
    %v228 = vsel %vm226, %v213, 0
    %230 = vmatprep.subr.bf16.mxu0 0
    %231 = vmatpush1.bf16.msra.mxu0 %v222
    %232 = vmatprep.subr.bf16.mxu0 0
    %233 = vmatpush1.bf16.msra.mxu0 %v223
    %234 = vmatprep.subr.bf16.mxu0 0
    %235 = vmatpush1.bf16.msra.mxu0 0
    %236 = vmatprep.subr.bf16.mxu0 0
    %237 = vmatpush1.bf16.msra.mxu0 0
    %238 = vmatprep.subr.bf16.mxu0 0
    %239 = vmatpush1.bf16.msra.mxu0 0
    %240 = vmatprep.subr.bf16.mxu0 0
    %241 = vmatpush1.bf16.msra.mxu0 0
    %242 = vmatprep.subr.bf16.mxu0 0
    %243 = vmatpush1.bf16.msra.mxu0 0
    %244 = vmatprep.subr.bf16.mxu0 0
    %245 = vmatpush1.bf16.msra.mxu0 0
    %246 = vmatprep.subr.bf16.mxu0 0
    %247 = vmatpush1.bf16.msra.mxu0 0
    %248 = vmatprep.subr.bf16.mxu0 0
    %249 = vmatpush1.bf16.msra.mxu0 0
    %250 = vmatprep.subr.bf16.mxu0 0
    %251 = vmatpush1.bf16.msra.mxu0 0
    %252 = vmatprep.subr.bf16.mxu0 0
    %253 = vmatpush1.bf16.msra.mxu0 0
    %254 = vmatprep.subr.bf16.mxu0 0
    %255 = vmatpush1.bf16.msra.mxu0 0
    %256 = vmatprep.subr.bf16.mxu0 0
    %257 = vmatpush1.bf16.msra.mxu0 0
    %258 = vmatprep.subr.bf16.mxu0 0
    %259 = vmatpush1.bf16.msra.mxu0 0
    %260 = vmatprep.subr.bf16.mxu0 0
    %261 = vmatpush1.bf16.msra.mxu0 0
    %262 = vmatprep.mubr.bf16.mxu0 0
    %263 = vmatmul.mubr.bf16.gmra.mrb[0].mxu0 %v228
    %v264 = vpop.f32.mrb[0].mxu0
    %v265 = vadd.f32 %v209, %v264
    %v266 = vpop.f32.mrb[0].mxu0
    %v267 = vpop.f32.mrb[0].mxu0
    %v268 = vpop.f32.mrb[0].mxu0
    %269 = vdwg.mxu0
    %v270 = vpack.c.bf16 %v265, %v265
    %v271 = vld [vmem:[%s4] sm:$0xf]
    %v272 = vld [vmem:[%s4 + $0x4] sm:$0xf]
    %v273 = vld [vmem:[%s4 + $0x8] sm:$0x3]
    %v274 = vld [vmem:[%s4 + $0xc] sm:$0xf]
    %v275 = vld [vmem:[%s4 + $0x10] sm:$0xf]
    %v276 = vld [vmem:[%s4 + $0x14] sm:$0x3]
    %v277 = vld [vmem:[%s13] sm:$0xf]
    %v278 = vld [vmem:[%s13 + $0x4] sm:$0xf]
    %v279 = vld [vmem:[%s13 + $0x8] sm:$0xf]
    %v280 = vld [vmem:[%s13 + $0xc] sm:$0xf]
    %v285 = vunpack.c.l.b16 %v277
    %v286 = vunpack.c.l.b16 %v278
    %v287 = vunpack.c.l.b16 %v279
    %v288 = vunpack.c.l.b16 %v280
    %v289 = vpack.c.b16 %v286, %v285
    %v290 = vpack.c.b16 %v288, %v287
    %v294 = vsel %vm226, %v270, 0
    %296 = vmatprep.subr.bf16.mxu0 0
    %297 = vmatpush1.bf16.msra.mxu0 %v289
    %298 = vmatprep.subr.bf16.mxu0 0
    %299 = vmatpush1.bf16.msra.mxu0 %v290
    %300 = vmatprep.subr.bf16.mxu0 0
    %301 = vmatpush1.bf16.msra.mxu0 0
    %302 = vmatprep.subr.bf16.mxu0 0
    %303 = vmatpush1.bf16.msra.mxu0 0
    %304 = vmatprep.subr.bf16.mxu0 0
    %305 = vmatpush1.bf16.msra.mxu0 0
    %306 = vmatprep.subr.bf16.mxu0 0
    %307 = vmatpush1.bf16.msra.mxu0 0
    %308 = vmatprep.subr.bf16.mxu0 0
    %309 = vmatpush1.bf16.msra.mxu0 0
    %310 = vmatprep.subr.bf16.mxu0 0
    %311 = vmatpush1.bf16.msra.mxu0 0
    %312 = vmatprep.subr.bf16.mxu0 0
    %313 = vmatpush1.bf16.msra.mxu0 0
    %314 = vmatprep.subr.bf16.mxu0 0
    %315 = vmatpush1.bf16.msra.mxu0 0
    %316 = vmatprep.subr.bf16.mxu0 0
    %317 = vmatpush1.bf16.msra.mxu0 0
    %318 = vmatprep.subr.bf16.mxu0 0
    %319 = vmatpush1.bf16.msra.mxu0 0
    %320 = vmatprep.subr.bf16.mxu0 0
    %321 = vmatpush1.bf16.msra.mxu0 0
    %322 = vmatprep.subr.bf16.mxu0 0
    %323 = vmatpush1.bf16.msra.mxu0 0
    %324 = vmatprep.subr.bf16.mxu0 0
    %325 = vmatpush1.bf16.msra.mxu0 0
    %326 = vmatprep.subr.bf16.mxu0 0
    %327 = vmatpush1.bf16.msra.mxu0 0
    %328 = vmatprep.mubr.bf16.mxu0 0
    %329 = vmatmul.mubr.bf16.gmra.mrb[0].mxu0 %v294
    %v330 = vpop.f32.mrb[0].mxu0
    %v331 = vadd.f32 0.0, %v330
    %v332 = vpop.f32.mrb[0].mxu0
    %v333 = vpop.f32.mrb[0].mxu0
    %v334 = vpop.f32.mrb[0].mxu0
    %335 = vdwg.mxu0
    %v336 = vpack.c.bf16 %v331, %v331
    %v339 = vunpack.c.l.s4 1966171168
    %v340 = vunpack.c.0.s8 %v339
    %v341 = vlaneseq
    %v342 = vshrl.u32 %v341, 7
    %v343 = vsub.s32 %v340, %v342
    %v344 = vrot.slane %v336, %v343
    %v346 = vunpack.c.l.s4 1966171168
    %v347 = vunpack.c.0.s8 %v346
    %v348 = vlaneseq
    %v349 = vshrl.u32 %v348, 7
    %v350 = vsub.s32 %v347, %v349
    %v351 = vrot.slane %v344, %v350
    %v352 = vunpack.i.l.s16 %v351
    %v353 = vunpack.i.h.s16 %v351
    %v354 = vpack.i.b16 %v352, %v352
    %v355 = vlaneseq
    %v356 = vshrl.u32 %v355, 7
    %v357 = vsub.s32 0, %v356
    %v358 = vrot.slane %v354, %v357
    %v362 = vunpack.c.l.b16 %v271
    %v363 = vunpack.c.l.b16 %v272
    %v364 = vunpack.c.l.b16 %v273
    %v365 = vpack.c.b16 %v363, %v362
    %v366 = vpack.c.b16 %v364, %v364
    %vm367 = vcmask 785408
    %v369 = vsel %vm367, %v358, 0
    %v372 = vsel %vm367, %v365, 0
    %v375 = vsel %vm367, %v366, 0
    %377 = vmatprep.subr.bf16.mxu0 0
    %378 = vmatpush1.bf16.xpose.msra.mxu0 %v372
    %379 = vmatprep.subr.bf16.mxu0 0
    %380 = vmatpush1.bf16.xpose.msra.mxu0 %v375
    %381 = vmatprep.subr.bf16.mxu0 0
    %382 = vmatpush1.bf16.xpose.msra.mxu0 0
    %383 = vmatprep.subr.bf16.mxu0 0
    %384 = vmatpush1.bf16.xpose.msra.mxu0 0
    %385 = vmatprep.subr.bf16.mxu0 0
    %386 = vmatpush1.bf16.xpose.msra.mxu0 0
    %387 = vmatprep.subr.bf16.mxu0 0
    %388 = vmatpush1.bf16.xpose.msra.mxu0 0
    %389 = vmatprep.subr.bf16.mxu0 0
    %390 = vmatpush1.bf16.xpose.msra.mxu0 0
    %391 = vmatprep.subr.bf16.mxu0 0
    %392 = vmatpush1.bf16.xpose.msra.mxu0 0
    %393 = vmatprep.subr.bf16.mxu0 0
    %394 = vmatpush1.bf16.xpose.msra.mxu0 0
    %395 = vmatprep.subr.bf16.mxu0 0
    %396 = vmatpush1.bf16.xpose.msra.mxu0 0
    %397 = vmatprep.subr.bf16.mxu0 0
    %398 = vmatpush1.bf16.xpose.msra.mxu0 0
    %399 = vmatprep.subr.bf16.mxu0 0
    %400 = vmatpush1.bf16.xpose.msra.mxu0 0
    %401 = vmatprep.subr.bf16.mxu0 0
    %402 = vmatpush1.bf16.xpose.msra.mxu0 0
    %403 = vmatprep.subr.bf16.mxu0 0
    %404 = vmatpush1.bf16.xpose.msra.mxu0 0
    %405 = vmatprep.subr.bf16.mxu0 0
    %406 = vmatpush1.bf16.xpose.msra.mxu0 0
    %407 = vmatprep.subr.bf16.mxu0 0
    %408 = vmatpush1.bf16.xpose.msra.mxu0 0
    %409 = vmatprep.mubr.bf16.mxu0 0
    %410 = vmatmul.mubr.bf16.gmra.mrb[0].mxu0 %v369
    %v411 = vpop.f32.mrb[0].mxu0
    %v412 = vadd.f32 0.0, %v411
    %v413 = vpop.f32.mrb[0].mxu0
    %v414 = vpop.f32.mrb[0].mxu0
    %v415 = vpop.f32.mrb[0].mxu0
    %416 = vdwg.mxu0
    %v417 = vpack.i.b16 %v353, %v353
    %v418 = vlaneseq
    %v419 = vshrl.u32 %v418, 7
    %v420 = vsub.s32 0, %v419
    %v421 = vrot.slane %v417, %v420
    %v425 = vunpack.c.l.b16 %v274
    %v426 = vunpack.c.l.b16 %v275
    %v427 = vunpack.c.l.b16 %v276
    %v428 = vpack.c.b16 %v426, %v425
    %v429 = vpack.c.b16 %v427, %v427
    %v431 = vsel %vm367, %v421, 0
    %v434 = vsel %vm367, %v428, 0
    %v437 = vsel %vm367, %v429, 0
    %439 = vmatprep.subr.bf16.mxu0 0
    %440 = vmatpush1.bf16.xpose.msra.mxu0 %v434
    %441 = vmatprep.subr.bf16.mxu0 0
    %442 = vmatpush1.bf16.xpose.msra.mxu0 %v437
    %443 = vmatprep.subr.bf16.mxu0 0
    %444 = vmatpush1.bf16.xpose.msra.mxu0 0
    %445 = vmatprep.subr.bf16.mxu0 0
    %446 = vmatpush1.bf16.xpose.msra.mxu0 0
    %447 = vmatprep.subr.bf16.mxu0 0
    %448 = vmatpush1.bf16.xpose.msra.mxu0 0
    %449 = vmatprep.subr.bf16.mxu0 0
    %450 = vmatpush1.bf16.xpose.msra.mxu0 0
    %451 = vmatprep.subr.bf16.mxu0 0
    %452 = vmatpush1.bf16.xpose.msra.mxu0 0
    %453 = vmatprep.subr.bf16.mxu0 0
    %454 = vmatpush1.bf16.xpose.msra.mxu0 0
    %455 = vmatprep.subr.bf16.mxu0 0
    %456 = vmatpush1.bf16.xpose.msra.mxu0 0
    %457 = vmatprep.subr.bf16.mxu0 0
    %458 = vmatpush1.bf16.xpose.msra.mxu0 0
    %459 = vmatprep.subr.bf16.mxu0 0
    %460 = vmatpush1.bf16.xpose.msra.mxu0 0
    %461 = vmatprep.subr.bf16.mxu0 0
    %462 = vmatpush1.bf16.xpose.msra.mxu0 0
    %463 = vmatprep.subr.bf16.mxu0 0
    %464 = vmatpush1.bf16.xpose.msra.mxu0 0
    %465 = vmatprep.subr.bf16.mxu0 0
    %466 = vmatpush1.bf16.xpose.msra.mxu0 0
    %467 = vmatprep.subr.bf16.mxu0 0
    %468 = vmatpush1.bf16.xpose.msra.mxu0 0
    %469 = vmatprep.subr.bf16.mxu0 0
    %470 = vmatpush1.bf16.xpose.msra.mxu0 0
    %471 = vmatprep.mubr.bf16.mxu0 0
    %472 = vmatmul.mubr.bf16.gmra.mrb[0].mxu0 %v431
    %v473 = vpop.f32.mrb[0].mxu0
    %v474 = vadd.f32 0.0, %v473
    %v475 = vpop.f32.mrb[0].mxu0
    %v476 = vpop.f32.mrb[0].mxu0
    %v477 = vpop.f32.mrb[0].mxu0
    %478 = vdwg.mxu0
    %vm479 = vcmask 155648
    %v480 = vsel %vm479, %v412, -inf
    %481 = vmax.xlane.f32.xlu0 %v480
    %v482 = vpop.xlane.xlu0 %481
    %v483 = vsel %vm479, %v474, -inf
    %484 = vmax.xlane.f32.xlu0 %v483
    %v485 = vpop.xlane.xlu0 %484
    %v486 = vsub.f32 %v412, %v482
    %v487 = vsub.f32 %v474, %v485
    %v488 = vmul.f32 %v486, 1.442695
    %v489 = vpow.pop %v488
    %v490 = vmul.f32 %v487, 1.442695
    %v491 = vpow.pop %v490
    %v492 = vsel %vm479, %v489, 0.0
    %493 = vadd.xlane.f32.xlu0 %v492
    %v494 = vpop.xlane.xlu0 %493
    %v495 = vsel %vm479, %v491, 0.0
    %496 = vadd.xlane.f32.xlu0 %v495
    %v497 = vpop.xlane.xlu0 %496
    %v498 = vrcp.pop %v494
    %v499 = vmul.f32 %v489, %v498
    %v500 = vrcp.pop %v497
    %v501 = vmul.f32 %v491, %v500
    %v502 = vpack.c.bf16 %v499, %v499
    %v503 = vpack.c.bf16 %v501, %v501
    %vm505 = vcmask 162816
    %v507 = vsel %vm505, %v502, 0
    %vm509 = vcmask 1041408
    %v510 = vsel %vm509, %v366, 0
    %512 = vmatprep.subr.bf16.mxu0 0
    %513 = vmatpush1.bf16.msra.mxu0 %v365
    %514 = vmatprep.subr.bf16.mxu0 0
    %515 = vmatpush1.bf16.msra.mxu0 %v510
    %516 = vmatprep.subr.bf16.mxu0 0
    %517 = vmatpush1.bf16.msra.mxu0 0
    %518 = vmatprep.subr.bf16.mxu0 0
    %519 = vmatpush1.bf16.msra.mxu0 0
    %520 = vmatprep.subr.bf16.mxu0 0
    %521 = vmatpush1.bf16.msra.mxu0 0
    %522 = vmatprep.subr.bf16.mxu0 0
    %523 = vmatpush1.bf16.msra.mxu0 0
    %524 = vmatprep.subr.bf16.mxu0 0
    %525 = vmatpush1.bf16.msra.mxu0 0
    %526 = vmatprep.subr.bf16.mxu0 0
    %527 = vmatpush1.bf16.msra.mxu0 0
    %528 = vmatprep.subr.bf16.mxu0 0
    %529 = vmatpush1.bf16.msra.mxu0 0
    %530 = vmatprep.subr.bf16.mxu0 0
    %531 = vmatpush1.bf16.msra.mxu0 0
    %532 = vmatprep.subr.bf16.mxu0 0
    %533 = vmatpush1.bf16.msra.mxu0 0
    %534 = vmatprep.subr.bf16.mxu0 0
    %535 = vmatpush1.bf16.msra.mxu0 0
    %536 = vmatprep.subr.bf16.mxu0 0
    %537 = vmatpush1.bf16.msra.mxu0 0
    %538 = vmatprep.subr.bf16.mxu0 0
    %539 = vmatpush1.bf16.msra.mxu0 0
    %540 = vmatprep.subr.bf16.mxu0 0
    %541 = vmatpush1.bf16.msra.mxu0 0
    %542 = vmatprep.subr.bf16.mxu0 0
    %543 = vmatpush1.bf16.msra.mxu0 0
    %544 = vmatprep.mubr.bf16.mxu0 0
    %545 = vmatmul.mubr.bf16.gmra.mrb[0].mxu0 %v507
    %v546 = vpop.f32.mrb[0].mxu0
    %v547 = vadd.f32 0.0, %v546
    %v548 = vpop.f32.mrb[0].mxu0
    %v549 = vpop.f32.mrb[0].mxu0
    %v550 = vpop.f32.mrb[0].mxu0
    %551 = vdwg.mxu0
    %v554 = vsel %vm505, %v503, 0
    %v556 = vsel %vm509, %v429, 0
    %558 = vmatprep.subr.bf16.mxu0 0
    %559 = vmatpush1.bf16.msra.mxu0 %v428
    %560 = vmatprep.subr.bf16.mxu0 0
    %561 = vmatpush1.bf16.msra.mxu0 %v556
    %562 = vmatprep.subr.bf16.mxu0 0
    %563 = vmatpush1.bf16.msra.mxu0 0
    %564 = vmatprep.subr.bf16.mxu0 0
    %565 = vmatpush1.bf16.msra.mxu0 0
    %566 = vmatprep.subr.bf16.mxu0 0
    %567 = vmatpush1.bf16.msra.mxu0 0
    %568 = vmatprep.subr.bf16.mxu0 0
    %569 = vmatpush1.bf16.msra.mxu0 0
    %570 = vmatprep.subr.bf16.mxu0 0
    %571 = vmatpush1.bf16.msra.mxu0 0
    %572 = vmatprep.subr.bf16.mxu0 0
    %573 = vmatpush1.bf16.msra.mxu0 0
    %574 = vmatprep.subr.bf16.mxu0 0
    %575 = vmatpush1.bf16.msra.mxu0 0
    %576 = vmatprep.subr.bf16.mxu0 0
    %577 = vmatpush1.bf16.msra.mxu0 0
    %578 = vmatprep.subr.bf16.mxu0 0
    %579 = vmatpush1.bf16.msra.mxu0 0
    %580 = vmatprep.subr.bf16.mxu0 0
    %581 = vmatpush1.bf16.msra.mxu0 0
    %582 = vmatprep.subr.bf16.mxu0 0
    %583 = vmatpush1.bf16.msra.mxu0 0
    %584 = vmatprep.subr.bf16.mxu0 0
    %585 = vmatpush1.bf16.msra.mxu0 0
    %586 = vmatprep.subr.bf16.mxu0 0
    %587 = vmatpush1.bf16.msra.mxu0 0
    %588 = vmatprep.subr.bf16.mxu0 0
    %589 = vmatpush1.bf16.msra.mxu0 0
    %590 = vmatprep.mubr.bf16.mxu0 0
    %591 = vmatmul.mubr.bf16.gmra.mrb[0].mxu0 %v554
    %v592 = vpop.f32.mrb[0].mxu0
    %v593 = vadd.f32 0.0, %v592
    %v594 = vpop.f32.mrb[0].mxu0
    %v595 = vpop.f32.mrb[0].mxu0
    %v596 = vpop.f32.mrb[0].mxu0
    %597 = vdwg.mxu0
    %v598 = vpack.c.bf16 %v547, %v547
    %v599 = vpack.c.bf16 %v593, %v593
    %v600 = vld [vmem:[%s14] sm:$0xf]
    %v601 = vld [vmem:[%s14 + $0x4] sm:$0xf]
    %v602 = vld [vmem:[%s14 + $0x8] sm:$0xf]
    %v603 = vld [vmem:[%s14 + $0xc] sm:$0xf]
    %v604 = vld [vmem:[%s14 + $0x10] sm:$0xf]
    %v605 = vld [vmem:[%s14 + $0x14] sm:$0xf]
    %v606 = vld [vmem:[%s14 + $0x18] sm:$0xf]
    %v607 = vld [vmem:[%s14 + $0x1c] sm:$0xf]
    %v608 = vld [vmem:[%s14 + $0x20] sm:$0xf]
    %v609 = vld [vmem:[%s14 + $0x24] sm:$0xf]
    %v610 = vld [vmem:[%s14 + $0x28] sm:$0xf]
    %v611 = vld [vmem:[%s14 + $0x2c] sm:$0xf]
    %v614 = vunpack.c.l.b16 %v598
    %v615 = vunpack.c.l.b16 %v599
    %v616 = vrot.slane %v615, 7
    %vm617 = vcmask 1041409
    %v618 = vsel %vm617, %v616, %v614
    %v619 = vpack.c.b16 %v618, %v618
    %v632 = vunpack.c.l.b16 %v600
    %v633 = vunpack.c.l.b16 %v601
    %v634 = vunpack.c.l.b16 %v602
    %v635 = vunpack.c.l.b16 %v603
    %v636 = vunpack.c.l.b16 %v604
    %v637 = vunpack.c.l.b16 %v605
    %v638 = vunpack.c.l.b16 %v606
    %v639 = vunpack.c.l.b16 %v607
    %v640 = vunpack.c.l.b16 %v608
    %v641 = vunpack.c.l.b16 %v609
    %v642 = vunpack.c.l.b16 %v610
    %v643 = vunpack.c.l.b16 %v611
    %v644 = vpack.c.b16 %v633, %v632
    %v645 = vpack.c.b16 %v635, %v634
    %v646 = vpack.c.b16 %v637, %v636
    %v647 = vpack.c.b16 %v639, %v638
    %v648 = vpack.c.b16 %v641, %v640
    %v649 = vpack.c.b16 %v643, %v642
    %v657 = vsel %vm367, %v619, 0
    %659 = vmatprep.subr.bf16.mxu0 0
    %660 = vmatpush1.bf16.msra.mxu0 %v644
    %661 = vmatprep.subr.bf16.mxu0 0
    %662 = vmatpush1.bf16.msra.mxu0 %v645
    %663 = vmatprep.subr.bf16.mxu0 0
    %664 = vmatpush1.bf16.msra.mxu0 %v646
    %665 = vmatprep.subr.bf16.mxu0 0
    %666 = vmatpush1.bf16.msra.mxu0 %v647
    %667 = vmatprep.subr.bf16.mxu0 0
    %668 = vmatpush1.bf16.msra.mxu0 %v648
    %669 = vmatprep.subr.bf16.mxu0 0
    %670 = vmatpush1.bf16.msra.mxu0 %v649
    %671 = vmatprep.subr.bf16.mxu0 0
    %672 = vmatpush1.bf16.msra.mxu0 0
    %673 = vmatprep.subr.bf16.mxu0 0
    %674 = vmatpush1.bf16.msra.mxu0 0
    %675 = vmatprep.subr.bf16.mxu0 0
    %676 = vmatpush1.bf16.msra.mxu0 0
    %677 = vmatprep.subr.bf16.mxu0 0
    %678 = vmatpush1.bf16.msra.mxu0 0
    %679 = vmatprep.subr.bf16.mxu0 0
    %680 = vmatpush1.bf16.msra.mxu0 0
    %681 = vmatprep.subr.bf16.mxu0 0
    %682 = vmatpush1.bf16.msra.mxu0 0
    %683 = vmatprep.subr.bf16.mxu0 0
    %684 = vmatpush1.bf16.msra.mxu0 0
    %685 = vmatprep.subr.bf16.mxu0 0
    %686 = vmatpush1.bf16.msra.mxu0 0
    %687 = vmatprep.subr.bf16.mxu0 0
    %688 = vmatpush1.bf16.msra.mxu0 0
    %689 = vmatprep.subr.bf16.mxu0 0
    %690 = vmatpush1.bf16.msra.mxu0 0
    %691 = vmatprep.mubr.bf16.mxu0 0
    %692 = vmatmul.mubr.bf16.gmra.mrb[0].mxu0 %v657
    %v693 = vpop.f32.mrb[0].mxu0
    %v694 = vadd.f32 %v265, %v693
    %v695 = vpop.f32.mrb[0].mxu0
    %v696 = vpop.f32.mrb[0].mxu0
    %v697 = vpop.f32.mrb[0].mxu0
    %698 = vdwg.mxu0
    %v699 = vpack.c.bf16 %v694, %v694
    %v700 = vld [vmem:[%s2] sm:$0xf]
    %v701 = vld [vmem:[%s2 + $0x4] sm:$0xf]
    %v702 = vld [vmem:[%s3] sm:$0x1]
    %v703 = vld [vmem:[%s3 + $0x1] sm:$0x1]
    %v704 = vld [vmem:[%s9] sm:$0xf]
    %v705 = vld [vmem:[%s9 + $0x4] sm:$0xf]
    %v706 = vld [vmem:[%s9 + $0x8] sm:$0xf]
    %v707 = vld [vmem:[%s9 + $0xc] sm:$0xf]
    %v712 = vunpack.c.l.b16 %v704
    %v713 = vunpack.c.l.b16 %v705
    %v714 = vunpack.c.l.b16 %v706
    %v715 = vunpack.c.l.b16 %v707
    %v716 = vpack.c.b16 %v713, %v712
    %v717 = vpack.c.b16 %v715, %v714
    %720 = vmatprep.subr.bf16.mxu0 0
    %721 = vmatpush1.bf16.msra.mxu0 %v716
    %722 = vmatprep.subr.bf16.mxu0 0
    %723 = vmatpush1.bf16.msra.mxu0 %v717
    %724 = vmatprep.subr.bf16.mxu0 0
    %725 = vmatpush1.bf16.msra.mxu0 0
    %726 = vmatprep.subr.bf16.mxu0 0
    %727 = vmatpush1.bf16.msra.mxu0 0
    %728 = vmatprep.subr.bf16.mxu0 0
    %729 = vmatpush1.bf16.msra.mxu0 0
    %730 = vmatprep.subr.bf16.mxu0 0
    %731 = vmatpush1.bf16.msra.mxu0 0
    %732 = vmatprep.subr.bf16.mxu0 0
    %733 = vmatpush1.bf16.msra.mxu0 0
    %734 = vmatprep.subr.bf16.mxu0 0
    %735 = vmatpush1.bf16.msra.mxu0 0
    %736 = vmatprep.subr.bf16.mxu0 0
    %737 = vmatpush1.bf16.msra.mxu0 0
    %738 = vmatprep.subr.bf16.mxu0 0
    %739 = vmatpush1.bf16.msra.mxu0 0
    %740 = vmatprep.subr.bf16.mxu0 0
    %741 = vmatpush1.bf16.msra.mxu0 0
    %742 = vmatprep.subr.bf16.mxu0 0
    %743 = vmatpush1.bf16.msra.mxu0 0
    %744 = vmatprep.subr.bf16.mxu0 0
    %745 = vmatpush1.bf16.msra.mxu0 0
    %746 = vmatprep.subr.bf16.mxu0 0
    %747 = vmatpush1.bf16.msra.mxu0 0
    %748 = vmatprep.subr.bf16.mxu0 0
    %749 = vmatpush1.bf16.msra.mxu0 0
    %750 = vmatprep.subr.bf16.mxu0 0
    %751 = vmatpush1.bf16.msra.mxu0 0
    %752 = vmatprep.mubr.bf16.mxu0 0
    %753 = vmatmul.mubr.bf16.gmra.mrb[0].mxu0 %v228
    %v754 = vpop.f32.mrb[0].mxu0
    %v755 = vadd.f32 0.0, %v754
    %v756 = vpop.f32.mrb[0].mxu0
    %v757 = vpop.f32.mrb[0].mxu0
    %v758 = vpop.f32.mrb[0].mxu0
    %759 = vdwg.mxu0
    %v760 = vpack.c.bf16 %v755, %v755
    %v763 = vunpack.c.l.s4 1966171168
    %v764 = vunpack.c.0.s8 %v763
    %v765 = vlaneseq
    %v766 = vshrl.u32 %v765, 7
    %v767 = vsub.s32 %v764, %v766
    %v768 = vrot.slane %v760, %v767
    %v770 = vunpack.c.l.s4 1966171168
    %v771 = vunpack.c.0.s8 %v770
    %v772 = vlaneseq
    %v773 = vshrl.u32 %v772, 7
    %v774 = vsub.s32 %v771, %v773
    %v775 = vrot.slane %v768, %v774
    %v776 = vunpack.i.l.s16 %v775
    %v777 = vunpack.i.h.s16 %v775
    %v778 = vpack.i.b16 %v776, %v776
    %v779 = vlaneseq
    %v780 = vshrl.u32 %v779, 7
    %v781 = vsub.s32 0, %v780
    %v782 = vrot.slane %v778, %v781
    %v784 = vsel %vm226, %v782, 0
    %v787 = vsel %vm226, %v700, 0
    %789 = vmatprep.subr.bf16.mxu0 0
    %790 = vmatpush1.bf16.xpose.msra.mxu0 %v787
    %791 = vmatprep.subr.bf16.mxu0 0
    %792 = vmatpush1.bf16.xpose.msra.mxu0 0
    %793 = vmatprep.subr.bf16.mxu0 0
    %794 = vmatpush1.bf16.xpose.msra.mxu0 0
    %795 = vmatprep.subr.bf16.mxu0 0
    %796 = vmatpush1.bf16.xpose.msra.mxu0 0
    %797 = vmatprep.subr.bf16.mxu0 0
    %798 = vmatpush1.bf16.xpose.msra.mxu0 0
    %799 = vmatprep.subr.bf16.mxu0 0
    %800 = vmatpush1.bf16.xpose.msra.mxu0 0
    %801 = vmatprep.subr.bf16.mxu0 0
    %802 = vmatpush1.bf16.xpose.msra.mxu0 0
    %803 = vmatprep.subr.bf16.mxu0 0
    %804 = vmatpush1.bf16.xpose.msra.mxu0 0
    %805 = vmatprep.subr.bf16.mxu0 0
    %806 = vmatpush1.bf16.xpose.msra.mxu0 0
    %807 = vmatprep.subr.bf16.mxu0 0
    %808 = vmatpush1.bf16.xpose.msra.mxu0 0
    %809 = vmatprep.subr.bf16.mxu0 0
    %810 = vmatpush1.bf16.xpose.msra.mxu0 0
    %811 = vmatprep.subr.bf16.mxu0 0
    %812 = vmatpush1.bf16.xpose.msra.mxu0 0
    %813 = vmatprep.subr.bf16.mxu0 0
    %814 = vmatpush1.bf16.xpose.msra.mxu0 0
    %815 = vmatprep.subr.bf16.mxu0 0
    %816 = vmatpush1.bf16.xpose.msra.mxu0 0
    %817 = vmatprep.subr.bf16.mxu0 0
    %818 = vmatpush1.bf16.xpose.msra.mxu0 0
    %819 = vmatprep.subr.bf16.mxu0 0
    %820 = vmatpush1.bf16.xpose.msra.mxu0 0
    %821 = vmatprep.mubr.bf16.mxu0 0
    %822 = vmatmul.mubr.bf16.gmra.mrb[0].mxu0 %v784
    %v823 = vpop.f32.mrb[0].mxu0
    %v824 = vadd.f32 0.0, %v823
    %v825 = vpop.f32.mrb[0].mxu0
    %v826 = vpop.f32.mrb[0].mxu0
    %v827 = vpop.f32.mrb[0].mxu0
    %828 = vdwg.mxu0
    %v829 = vpack.i.b16 %v777, %v777
    %v830 = vlaneseq
    %v831 = vshrl.u32 %v830, 7
    %v832 = vsub.s32 0, %v831
    %v833 = vrot.slane %v829, %v832
    %v835 = vsel %vm226, %v833, 0
    %v838 = vsel %vm226, %v701, 0
    %840 = vmatprep.subr.bf16.mxu0 0
    %841 = vmatpush1.bf16.xpose.msra.mxu0 %v838
    %842 = vmatprep.subr.bf16.mxu0 0
    %843 = vmatpush1.bf16.xpose.msra.mxu0 0
    %844 = vmatprep.subr.bf16.mxu0 0
    %845 = vmatpush1.bf16.xpose.msra.mxu0 0
    %846 = vmatprep.subr.bf16.mxu0 0
    %847 = vmatpush1.bf16.xpose.msra.mxu0 0
    %848 = vmatprep.subr.bf16.mxu0 0
    %849 = vmatpush1.bf16.xpose.msra.mxu0 0
    %850 = vmatprep.subr.bf16.mxu0 0
    %851 = vmatpush1.bf16.xpose.msra.mxu0 0
    %852 = vmatprep.subr.bf16.mxu0 0
    %853 = vmatpush1.bf16.xpose.msra.mxu0 0
    %854 = vmatprep.subr.bf16.mxu0 0
    %855 = vmatpush1.bf16.xpose.msra.mxu0 0
    %856 = vmatprep.subr.bf16.mxu0 0
    %857 = vmatpush1.bf16.xpose.msra.mxu0 0
    %858 = vmatprep.subr.bf16.mxu0 0
    %859 = vmatpush1.bf16.xpose.msra.mxu0 0
    %860 = vmatprep.subr.bf16.mxu0 0
    %861 = vmatpush1.bf16.xpose.msra.mxu0 0
    %862 = vmatprep.subr.bf16.mxu0 0
    %863 = vmatpush1.bf16.xpose.msra.mxu0 0
    %864 = vmatprep.subr.bf16.mxu0 0
    %865 = vmatpush1.bf16.xpose.msra.mxu0 0
    %866 = vmatprep.subr.bf16.mxu0 0
    %867 = vmatpush1.bf16.xpose.msra.mxu0 0
    %868 = vmatprep.subr.bf16.mxu0 0
    %869 = vmatpush1.bf16.xpose.msra.mxu0 0
    %870 = vmatprep.subr.bf16.mxu0 0
    %871 = vmatpush1.bf16.xpose.msra.mxu0 0
    %872 = vmatprep.mubr.bf16.mxu0 0
    %873 = vmatmul.mubr.bf16.gmra.mrb[0].mxu0 %v835
    %v874 = vpop.f32.mrb[0].mxu0
    %v875 = vadd.f32 0.0, %v874
    %v876 = vpop.f32.mrb[0].mxu0
    %v877 = vpop.f32.mrb[0].mxu0
    %v878 = vpop.f32.mrb[0].mxu0
    %879 = vdwg.mxu0
    %vm880 = vcmp.gt.f32.partialorder %v702, 0.5
    %vm881 = vcmp.gt.f32.partialorder %v703, 0.5
    %v882 = vsel %vm880, -1e+30, %v824
    %v883 = vsel %vm881, -1e+30, %v875
    %vm884 = vcmask 57344
    %v885 = vsel %vm884, %v882, -inf
    %886 = vmax.xlane.f32.xlu0 %v885
    %v887 = vpop.xlane.xlu0 %886
    %v888 = vsel %vm884, %v883, -inf
    %889 = vmax.xlane.f32.xlu0 %v888
    %v890 = vpop.xlane.xlu0 %889
    %v891 = vsub.f32 %v882, %v887
    %v892 = vsub.f32 %v883, %v890
    %v893 = vmul.f32 %v891, 1.442695
    %v894 = vpow.pop %v893
    %v895 = vmul.f32 %v892, 1.442695
    %v896 = vpow.pop %v895
    %v897 = vsel %vm884, %v894, 0.0
    %898 = vadd.xlane.f32.xlu0 %v897
    %v899 = vpop.xlane.xlu0 %898
    %v900 = vsel %vm884, %v896, 0.0
    %901 = vadd.xlane.f32.xlu0 %v900
    %v902 = vpop.xlane.xlu0 %901
    %v903 = vrcp.pop %v899
    %v904 = vmul.f32 %v894, %v903
    %v905 = vrcp.pop %v902
    %v906 = vmul.f32 %v896, %v905
    %v907 = vpack.c.bf16 %v904, %v904
    %v908 = vpack.c.bf16 %v906, %v906
    %vm909 = vcmask 64512
    %v911 = vsel %vm909, %v907, 0
    %vm913 = vcmask 1043456
    %v914 = vsel %vm913, %v700, 0
    %916 = vmatprep.subr.bf16.mxu0 0
    %917 = vmatpush1.bf16.msra.mxu0 %v914
    %918 = vmatprep.subr.bf16.mxu0 0
    %919 = vmatpush1.bf16.msra.mxu0 0
    %920 = vmatprep.subr.bf16.mxu0 0
    %921 = vmatpush1.bf16.msra.mxu0 0
    %922 = vmatprep.subr.bf16.mxu0 0
    %923 = vmatpush1.bf16.msra.mxu0 0
    %924 = vmatprep.subr.bf16.mxu0 0
    %925 = vmatpush1.bf16.msra.mxu0 0
    %926 = vmatprep.subr.bf16.mxu0 0
    %927 = vmatpush1.bf16.msra.mxu0 0
    %928 = vmatprep.subr.bf16.mxu0 0
    %929 = vmatpush1.bf16.msra.mxu0 0
    %930 = vmatprep.subr.bf16.mxu0 0
    %931 = vmatpush1.bf16.msra.mxu0 0
    %932 = vmatprep.subr.bf16.mxu0 0
    %933 = vmatpush1.bf16.msra.mxu0 0
    %934 = vmatprep.subr.bf16.mxu0 0
    %935 = vmatpush1.bf16.msra.mxu0 0
    %936 = vmatprep.subr.bf16.mxu0 0
    %937 = vmatpush1.bf16.msra.mxu0 0
    %938 = vmatprep.subr.bf16.mxu0 0
    %939 = vmatpush1.bf16.msra.mxu0 0
    %940 = vmatprep.subr.bf16.mxu0 0
    %941 = vmatpush1.bf16.msra.mxu0 0
    %942 = vmatprep.subr.bf16.mxu0 0
    %943 = vmatpush1.bf16.msra.mxu0 0
    %944 = vmatprep.subr.bf16.mxu0 0
    %945 = vmatpush1.bf16.msra.mxu0 0
    %946 = vmatprep.subr.bf16.mxu0 0
    %947 = vmatpush1.bf16.msra.mxu0 0
    %948 = vmatprep.mubr.bf16.mxu0 0
    %949 = vmatmul.mubr.bf16.gmra.mrb[0].mxu0 %v911
    %v950 = vpop.f32.mrb[0].mxu0
    %v951 = vadd.f32 0.0, %v950
    %v952 = vpop.f32.mrb[0].mxu0
    %v953 = vpop.f32.mrb[0].mxu0
    %v954 = vpop.f32.mrb[0].mxu0
    %955 = vdwg.mxu0
    %v957 = vsel %vm909, %v908, 0
    %v959 = vsel %vm913, %v701, 0
    %961 = vmatprep.subr.bf16.mxu0 0
    %962 = vmatpush1.bf16.msra.mxu0 %v959
    %963 = vmatprep.subr.bf16.mxu0 0
    %964 = vmatpush1.bf16.msra.mxu0 0
    %965 = vmatprep.subr.bf16.mxu0 0
    %966 = vmatpush1.bf16.msra.mxu0 0
    %967 = vmatprep.subr.bf16.mxu0 0
    %968 = vmatpush1.bf16.msra.mxu0 0
    %969 = vmatprep.subr.bf16.mxu0 0
    %970 = vmatpush1.bf16.msra.mxu0 0
    %971 = vmatprep.subr.bf16.mxu0 0
    %972 = vmatpush1.bf16.msra.mxu0 0
    %973 = vmatprep.subr.bf16.mxu0 0
    %974 = vmatpush1.bf16.msra.mxu0 0
    %975 = vmatprep.subr.bf16.mxu0 0
    %976 = vmatpush1.bf16.msra.mxu0 0
    %977 = vmatprep.subr.bf16.mxu0 0
    %978 = vmatpush1.bf16.msra.mxu0 0
    %979 = vmatprep.subr.bf16.mxu0 0
    %980 = vmatpush1.bf16.msra.mxu0 0
    %981 = vmatprep.subr.bf16.mxu0 0
    %982 = vmatpush1.bf16.msra.mxu0 0
    %983 = vmatprep.subr.bf16.mxu0 0
    %984 = vmatpush1.bf16.msra.mxu0 0
    %985 = vmatprep.subr.bf16.mxu0 0
    %986 = vmatpush1.bf16.msra.mxu0 0
    %987 = vmatprep.subr.bf16.mxu0 0
    %988 = vmatpush1.bf16.msra.mxu0 0
    %989 = vmatprep.subr.bf16.mxu0 0
    %990 = vmatpush1.bf16.msra.mxu0 0
    %991 = vmatprep.subr.bf16.mxu0 0
    %992 = vmatpush1.bf16.msra.mxu0 0
    %993 = vmatprep.mubr.bf16.mxu0 0
    %994 = vmatmul.mubr.bf16.gmra.mrb[0].mxu0 %v957
    %v995 = vpop.f32.mrb[0].mxu0
    %v996 = vadd.f32 0.0, %v995
    %v997 = vpop.f32.mrb[0].mxu0
    %v998 = vpop.f32.mrb[0].mxu0
    %v999 = vpop.f32.mrb[0].mxu0
    %1000 = vdwg.mxu0
    %v1003 = vrot.slane %v996, 7
    %v1004 = vsel %vm617, %v1003, %v951
    %1007 = vrot.lane.b32.xlu0 %v198, 64
    %v1008 = vpop.permute.xlu0 %1007
    %v1010 = vsel %vm226, %v1004, %v1008
    %v1011 = vpack.c.bf16 %v1010, %v1010
    %v1012 = vld [vmem:[%s10] sm:$0xf]
    %v1013 = vld [vmem:[%s10 + $0x4] sm:$0xf]
    %v1014 = vld [vmem:[%s10 + $0x8] sm:$0xf]
    %v1015 = vld [vmem:[%s10 + $0xc] sm:$0xf]
    %v1016 = vld [vmem:[%s10 + $0x10] sm:$0xf]
    %v1017 = vld [vmem:[%s10 + $0x14] sm:$0xf]
    %v1018 = vld [vmem:[%s10 + $0x18] sm:$0xf]
    %v1019 = vld [vmem:[%s10 + $0x1c] sm:$0xf]
    %v1028 = vunpack.c.l.b16 %v1012
    %v1029 = vunpack.c.l.b16 %v1013
    %v1030 = vunpack.c.l.b16 %v1014
    %v1031 = vunpack.c.l.b16 %v1015
    %v1032 = vunpack.c.l.b16 %v1016
    %v1033 = vunpack.c.l.b16 %v1017
    %v1034 = vunpack.c.l.b16 %v1018
    %v1035 = vunpack.c.l.b16 %v1019
    %v1036 = vpack.c.b16 %v1029, %v1028
    %v1037 = vpack.c.b16 %v1031, %v1030
    %v1038 = vpack.c.b16 %v1033, %v1032
    %v1039 = vpack.c.b16 %v1035, %v1034
    %vm1044 = vcmask 523264
    %v1046 = vsel %vm1044, %v1011, 0
    %1048 = vmatprep.subr.bf16.mxu0 0
    %1049 = vmatpush1.bf16.msra.mxu0 %v1036
    %1050 = vmatprep.subr.bf16.mxu0 0
    %1051 = vmatpush1.bf16.msra.mxu0 %v1037
    %1052 = vmatprep.subr.bf16.mxu0 0
    %1053 = vmatpush1.bf16.msra.mxu0 %v1038
    %1054 = vmatprep.subr.bf16.mxu0 0
    %1055 = vmatpush1.bf16.msra.mxu0 %v1039
    %1056 = vmatprep.subr.bf16.mxu0 0
    %1057 = vmatpush1.bf16.msra.mxu0 0
    %1058 = vmatprep.subr.bf16.mxu0 0
    %1059 = vmatpush1.bf16.msra.mxu0 0
    %1060 = vmatprep.subr.bf16.mxu0 0
    %1061 = vmatpush1.bf16.msra.mxu0 0
    %1062 = vmatprep.subr.bf16.mxu0 0
    %1063 = vmatpush1.bf16.msra.mxu0 0
    %1064 = vmatprep.subr.bf16.mxu0 0
    %1065 = vmatpush1.bf16.msra.mxu0 0
    %1066 = vmatprep.subr.bf16.mxu0 0
    %1067 = vmatpush1.bf16.msra.mxu0 0
    %1068 = vmatprep.subr.bf16.mxu0 0
    %1069 = vmatpush1.bf16.msra.mxu0 0
    %1070 = vmatprep.subr.bf16.mxu0 0
    %1071 = vmatpush1.bf16.msra.mxu0 0
    %1072 = vmatprep.subr.bf16.mxu0 0
    %1073 = vmatpush1.bf16.msra.mxu0 0
    %1074 = vmatprep.subr.bf16.mxu0 0
    %1075 = vmatpush1.bf16.msra.mxu0 0
    %1076 = vmatprep.subr.bf16.mxu0 0
    %1077 = vmatpush1.bf16.msra.mxu0 0
    %1078 = vmatprep.subr.bf16.mxu0 0
    %1079 = vmatpush1.bf16.msra.mxu0 0
    %1080 = vmatprep.mubr.bf16.mxu0 0
    %1081 = vmatmul.mubr.bf16.gmra.mrb[0].mxu0 %v1046
    %v1082 = vpop.f32.mrb[0].mxu0
    %v1083 = vadd.f32 0.0, %v1082
    %v1084 = vpop.f32.mrb[0].mxu0
    %v1085 = vpop.f32.mrb[0].mxu0
    %v1086 = vpop.f32.mrb[0].mxu0
    %1087 = vdwg.mxu0
    %v1088 = vtanh.pop %v1083
    %v1089 = vld [vmem:[%s11] sm:$0xf]
    %v1090 = vld [vmem:[%s11 + $0x4] sm:$0xf]
    %v1091 = vld [vmem:[%s11 + $0x8] sm:$0xf]
    %v1092 = vld [vmem:[%s11 + $0xc] sm:$0xf]
    %v1097 = vunpack.c.l.b16 %v1089
    %v1098 = vunpack.c.l.b16 %v1090
    %v1099 = vunpack.c.l.b16 %v1091
    %v1100 = vunpack.c.l.b16 %v1092
    %v1101 = vpack.c.b16 %v1098, %v1097
    %v1102 = vpack.c.b16 %v1100, %v1099
    %v1106 = vsel %vm226, %v699, 0
    %1108 = vmatprep.subr.bf16.mxu0 0
    %1109 = vmatpush1.bf16.msra.mxu0 %v1101
    %1110 = vmatprep.subr.bf16.mxu0 0
    %1111 = vmatpush1.bf16.msra.mxu0 %v1102
    %1112 = vmatprep.subr.bf16.mxu0 0
    %1113 = vmatpush1.bf16.msra.mxu0 0
    %1114 = vmatprep.subr.bf16.mxu0 0
    %1115 = vmatpush1.bf16.msra.mxu0 0
    %1116 = vmatprep.subr.bf16.mxu0 0
    %1117 = vmatpush1.bf16.msra.mxu0 0
    %1118 = vmatprep.subr.bf16.mxu0 0
    %1119 = vmatpush1.bf16.msra.mxu0 0
    %1120 = vmatprep.subr.bf16.mxu0 0
    %1121 = vmatpush1.bf16.msra.mxu0 0
    %1122 = vmatprep.subr.bf16.mxu0 0
    %1123 = vmatpush1.bf16.msra.mxu0 0
    %1124 = vmatprep.subr.bf16.mxu0 0
    %1125 = vmatpush1.bf16.msra.mxu0 0
    %1126 = vmatprep.subr.bf16.mxu0 0
    %1127 = vmatpush1.bf16.msra.mxu0 0
    %1128 = vmatprep.subr.bf16.mxu0 0
    %1129 = vmatpush1.bf16.msra.mxu0 0
    %1130 = vmatprep.subr.bf16.mxu0 0
    %1131 = vmatpush1.bf16.msra.mxu0 0
    %1132 = vmatprep.subr.bf16.mxu0 0
    %1133 = vmatpush1.bf16.msra.mxu0 0
    %1134 = vmatprep.subr.bf16.mxu0 0
    %1135 = vmatpush1.bf16.msra.mxu0 0
    %1136 = vmatprep.subr.bf16.mxu0 0
    %1137 = vmatpush1.bf16.msra.mxu0 0
    %1138 = vmatprep.subr.bf16.mxu0 0
    %1139 = vmatpush1.bf16.msra.mxu0 0
    %1140 = vmatprep.mubr.bf16.mxu0 0
    %1141 = vmatmul.mubr.bf16.gmra.mrb[0].mxu0 %v1106
    %v1142 = vpop.f32.mrb[0].mxu0
    %v1143 = vadd.f32 0.0, %v1142
    %v1144 = vpop.f32.mrb[0].mxu0
    %v1145 = vpop.f32.mrb[0].mxu0
    %v1146 = vpop.f32.mrb[0].mxu0
    %1147 = vdwg.mxu0
    %v1148 = vpack.c.bf16 %v1143, %v1143
    %v1151 = vunpack.c.l.s4 1966171168
    %v1152 = vunpack.c.0.s8 %v1151
    %v1153 = vlaneseq
    %v1154 = vshrl.u32 %v1153, 7
    %v1155 = vsub.s32 %v1152, %v1154
    %v1156 = vrot.slane %v1148, %v1155
    %v1158 = vunpack.c.l.s4 1966171168
    %v1159 = vunpack.c.0.s8 %v1158
    %v1160 = vlaneseq
    %v1161 = vshrl.u32 %v1160, 7
    %v1162 = vsub.s32 %v1159, %v1161
    %v1163 = vrot.slane %v1156, %v1162
    %v1164 = vunpack.i.l.s16 %v1163
    %v1165 = vunpack.i.h.s16 %v1163
    %v1166 = vpack.i.b16 %v1164, %v1164
    %v1167 = vlaneseq
    %v1168 = vshrl.u32 %v1167, 7
    %v1169 = vsub.s32 0, %v1168
    %v1170 = vrot.slane %v1166, %v1169
    %v1172 = vsel %vm226, %v1170, 0
    %1174 = vmatprep.subr.bf16.mxu0 0
    %1175 = vmatpush1.bf16.xpose.msra.mxu0 %v787
    %1176 = vmatprep.subr.bf16.mxu0 0
    %1177 = vmatpush1.bf16.xpose.msra.mxu0 0
    %1178 = vmatprep.subr.bf16.mxu0 0
    %1179 = vmatpush1.bf16.xpose.msra.mxu0 0
    %1180 = vmatprep.subr.bf16.mxu0 0
    %1181 = vmatpush1.bf16.xpose.msra.mxu0 0
    %1182 = vmatprep.subr.bf16.mxu0 0
    %1183 = vmatpush1.bf16.xpose.msra.mxu0 0
    %1184 = vmatprep.subr.bf16.mxu0 0
    %1185 = vmatpush1.bf16.xpose.msra.mxu0 0
    %1186 = vmatprep.subr.bf16.mxu0 0
    %1187 = vmatpush1.bf16.xpose.msra.mxu0 0
    %1188 = vmatprep.subr.bf16.mxu0 0
    %1189 = vmatpush1.bf16.xpose.msra.mxu0 0
    %1190 = vmatprep.subr.bf16.mxu0 0
    %1191 = vmatpush1.bf16.xpose.msra.mxu0 0
    %1192 = vmatprep.subr.bf16.mxu0 0
    %1193 = vmatpush1.bf16.xpose.msra.mxu0 0
    %1194 = vmatprep.subr.bf16.mxu0 0
    %1195 = vmatpush1.bf16.xpose.msra.mxu0 0
    %1196 = vmatprep.subr.bf16.mxu0 0
    %1197 = vmatpush1.bf16.xpose.msra.mxu0 0
    %1198 = vmatprep.subr.bf16.mxu0 0
    %1199 = vmatpush1.bf16.xpose.msra.mxu0 0
    %1200 = vmatprep.subr.bf16.mxu0 0
    %1201 = vmatpush1.bf16.xpose.msra.mxu0 0
    %1202 = vmatprep.subr.bf16.mxu0 0
    %1203 = vmatpush1.bf16.xpose.msra.mxu0 0
    %1204 = vmatprep.subr.bf16.mxu0 0
    %1205 = vmatpush1.bf16.xpose.msra.mxu0 0
    %1206 = vmatprep.mubr.bf16.mxu0 0
    %1207 = vmatmul.mubr.bf16.gmra.mrb[0].mxu0 %v1172
    %v1208 = vpop.f32.mrb[0].mxu0
    %v1209 = vadd.f32 0.0, %v1208
    %v1210 = vpop.f32.mrb[0].mxu0
    %v1211 = vpop.f32.mrb[0].mxu0
    %v1212 = vpop.f32.mrb[0].mxu0
    %1213 = vdwg.mxu0
    %v1214 = vpack.i.b16 %v1165, %v1165
    %v1215 = vlaneseq
    %v1216 = vshrl.u32 %v1215, 7
    %v1217 = vsub.s32 0, %v1216
    %v1218 = vrot.slane %v1214, %v1217
    %v1220 = vsel %vm226, %v1218, 0
    %1222 = vmatprep.subr.bf16.mxu0 0
    %1223 = vmatpush1.bf16.xpose.msra.mxu0 %v838
    %1224 = vmatprep.subr.bf16.mxu0 0
    %1225 = vmatpush1.bf16.xpose.msra.mxu0 0
    %1226 = vmatprep.subr.bf16.mxu0 0
    %1227 = vmatpush1.bf16.xpose.msra.mxu0 0
    %1228 = vmatprep.subr.bf16.mxu0 0
    %1229 = vmatpush1.bf16.xpose.msra.mxu0 0
    %1230 = vmatprep.subr.bf16.mxu0 0
    %1231 = vmatpush1.bf16.xpose.msra.mxu0 0
    %1232 = vmatprep.subr.bf16.mxu0 0
    %1233 = vmatpush1.bf16.xpose.msra.mxu0 0
    %1234 = vmatprep.subr.bf16.mxu0 0
    %1235 = vmatpush1.bf16.xpose.msra.mxu0 0
    %1236 = vmatprep.subr.bf16.mxu0 0
    %1237 = vmatpush1.bf16.xpose.msra.mxu0 0
    %1238 = vmatprep.subr.bf16.mxu0 0
    %1239 = vmatpush1.bf16.xpose.msra.mxu0 0
    %1240 = vmatprep.subr.bf16.mxu0 0
    %1241 = vmatpush1.bf16.xpose.msra.mxu0 0
    %1242 = vmatprep.subr.bf16.mxu0 0
    %1243 = vmatpush1.bf16.xpose.msra.mxu0 0
    %1244 = vmatprep.subr.bf16.mxu0 0
    %1245 = vmatpush1.bf16.xpose.msra.mxu0 0
    %1246 = vmatprep.subr.bf16.mxu0 0
    %1247 = vmatpush1.bf16.xpose.msra.mxu0 0
    %1248 = vmatprep.subr.bf16.mxu0 0
    %1249 = vmatpush1.bf16.xpose.msra.mxu0 0
    %1250 = vmatprep.subr.bf16.mxu0 0
    %1251 = vmatpush1.bf16.xpose.msra.mxu0 0
    %1252 = vmatprep.subr.bf16.mxu0 0
    %1253 = vmatpush1.bf16.xpose.msra.mxu0 0
    %1254 = vmatprep.mubr.bf16.mxu0 0
    %1255 = vmatmul.mubr.bf16.gmra.mrb[0].mxu0 %v1220
    %v1256 = vpop.f32.mrb[0].mxu0
    %v1257 = vadd.f32 0.0, %v1256
    %v1258 = vpop.f32.mrb[0].mxu0
    %v1259 = vpop.f32.mrb[0].mxu0
    %v1260 = vpop.f32.mrb[0].mxu0
    %1261 = vdwg.mxu0
    %v1262 = vsel %vm880, -1e+30, %v1209
    %v1263 = vsel %vm881, -1e+30, %v1257
    %v1264 = vsel %vm884, %v1262, -inf
    %1265 = vmax.xlane.f32.xlu0 %v1264
    %v1266 = vpop.xlane.xlu0 %1265
    %v1267 = vsel %vm884, %v1263, -inf
    %1268 = vmax.xlane.f32.xlu0 %v1267
    %v1269 = vpop.xlane.xlu0 %1268
    %v1270 = vsub.f32 %v1262, %v1266
    %v1271 = vsub.f32 %v1263, %v1269
    %v1272 = vmul.f32 %v1270, 1.442695
    %v1273 = vpow.pop %v1272
    %v1274 = vmul.f32 %v1271, 1.442695
    %v1275 = vpow.pop %v1274
    %v1276 = vsel %vm884, %v1273, 0.0
    %1277 = vadd.xlane.f32.xlu0 %v1276
    %v1278 = vpop.xlane.xlu0 %1277
    %v1279 = vsel %vm884, %v1275, 0.0
    %1280 = vadd.xlane.f32.xlu0 %v1279
    %v1281 = vpop.xlane.xlu0 %1280
    %v1282 = vrcp.pop %v1278
    %v1283 = vmul.f32 %v1273, %v1282
    %v1284 = vrcp.pop %v1281
    %v1285 = vmul.f32 %v1275, %v1284
    %v1286 = vpack.c.bf16 %v1283, %v1283
    %v1287 = vpack.c.bf16 %v1285, %v1285
    %v1289 = vsel %vm909, %v1286, 0
    %1291 = vmatprep.subr.bf16.mxu0 0
    %1292 = vmatpush1.bf16.msra.mxu0 %v914
    %1293 = vmatprep.subr.bf16.mxu0 0
    %1294 = vmatpush1.bf16.msra.mxu0 0
    %1295 = vmatprep.subr.bf16.mxu0 0
    %1296 = vmatpush1.bf16.msra.mxu0 0
    %1297 = vmatprep.subr.bf16.mxu0 0
    %1298 = vmatpush1.bf16.msra.mxu0 0
    %1299 = vmatprep.subr.bf16.mxu0 0
    %1300 = vmatpush1.bf16.msra.mxu0 0
    %1301 = vmatprep.subr.bf16.mxu0 0
    %1302 = vmatpush1.bf16.msra.mxu0 0
    %1303 = vmatprep.subr.bf16.mxu0 0
    %1304 = vmatpush1.bf16.msra.mxu0 0
    %1305 = vmatprep.subr.bf16.mxu0 0
    %1306 = vmatpush1.bf16.msra.mxu0 0
    %1307 = vmatprep.subr.bf16.mxu0 0
    %1308 = vmatpush1.bf16.msra.mxu0 0
    %1309 = vmatprep.subr.bf16.mxu0 0
    %1310 = vmatpush1.bf16.msra.mxu0 0
    %1311 = vmatprep.subr.bf16.mxu0 0
    %1312 = vmatpush1.bf16.msra.mxu0 0
    %1313 = vmatprep.subr.bf16.mxu0 0
    %1314 = vmatpush1.bf16.msra.mxu0 0
    %1315 = vmatprep.subr.bf16.mxu0 0
    %1316 = vmatpush1.bf16.msra.mxu0 0
    %1317 = vmatprep.subr.bf16.mxu0 0
    %1318 = vmatpush1.bf16.msra.mxu0 0
    %1319 = vmatprep.subr.bf16.mxu0 0
    %1320 = vmatpush1.bf16.msra.mxu0 0
    %1321 = vmatprep.subr.bf16.mxu0 0
    %1322 = vmatpush1.bf16.msra.mxu0 0
    %1323 = vmatprep.mubr.bf16.mxu0 0
    %1324 = vmatmul.mubr.bf16.gmra.mrb[0].mxu0 %v1289
    %v1325 = vpop.f32.mrb[0].mxu0
    %v1326 = vadd.f32 0.0, %v1325
    %v1327 = vpop.f32.mrb[0].mxu0
    %v1328 = vpop.f32.mrb[0].mxu0
    %v1329 = vpop.f32.mrb[0].mxu0
    %1330 = vdwg.mxu0
    %v1332 = vsel %vm909, %v1287, 0
    %1334 = vmatprep.subr.bf16.mxu0 0
    %1335 = vmatpush1.bf16.msra.mxu0 %v959
    %1336 = vmatprep.subr.bf16.mxu0 0
    %1337 = vmatpush1.bf16.msra.mxu0 0
    %1338 = vmatprep.subr.bf16.mxu0 0
    %1339 = vmatpush1.bf16.msra.mxu0 0
    %1340 = vmatprep.subr.bf16.mxu0 0
    %1341 = vmatpush1.bf16.msra.mxu0 0
    %1342 = vmatprep.subr.bf16.mxu0 0
    %1343 = vmatpush1.bf16.msra.mxu0 0
    %1344 = vmatprep.subr.bf16.mxu0 0
    %1345 = vmatpush1.bf16.msra.mxu0 0
    %1346 = vmatprep.subr.bf16.mxu0 0
    %1347 = vmatpush1.bf16.msra.mxu0 0
    %1348 = vmatprep.subr.bf16.mxu0 0
    %1349 = vmatpush1.bf16.msra.mxu0 0
    %1350 = vmatprep.subr.bf16.mxu0 0
    %1351 = vmatpush1.bf16.msra.mxu0 0
    %1352 = vmatprep.subr.bf16.mxu0 0
    %1353 = vmatpush1.bf16.msra.mxu0 0
    %1354 = vmatprep.subr.bf16.mxu0 0
    %1355 = vmatpush1.bf16.msra.mxu0 0
    %1356 = vmatprep.subr.bf16.mxu0 0
    %1357 = vmatpush1.bf16.msra.mxu0 0
    %1358 = vmatprep.subr.bf16.mxu0 0
    %1359 = vmatpush1.bf16.msra.mxu0 0
    %1360 = vmatprep.subr.bf16.mxu0 0
    %1361 = vmatpush1.bf16.msra.mxu0 0
    %1362 = vmatprep.subr.bf16.mxu0 0
    %1363 = vmatpush1.bf16.msra.mxu0 0
    %1364 = vmatprep.subr.bf16.mxu0 0
    %1365 = vmatpush1.bf16.msra.mxu0 0
    %1366 = vmatprep.mubr.bf16.mxu0 0
    %1367 = vmatmul.mubr.bf16.gmra.mrb[0].mxu0 %v1332
    %v1368 = vpop.f32.mrb[0].mxu0
    %v1369 = vadd.f32 0.0, %v1368
    %v1370 = vpop.f32.mrb[0].mxu0
    %v1371 = vpop.f32.mrb[0].mxu0
    %v1372 = vpop.f32.mrb[0].mxu0
    %1373 = vdwg.mxu0
    %v1376 = vrot.slane %v1369, 7
    %v1377 = vsel %vm617, %v1376, %v1326
    %1380 = vrot.lane.b32.xlu0 %v694, 32
    %v1381 = vpop.permute.xlu0 %1380
    %v1383 = vsel %vm226, %v1377, %v1381
    %v1384 = vpack.c.bf16 %v1383, %v1383
    %v1385 = vld [vmem:[%s12] sm:$0xf]
    %v1386 = vld [vmem:[%s12 + $0x4] sm:$0xf]
    %v1387 = vld [vmem:[%s12 + $0x8] sm:$0xf]
    %v1388 = vld [vmem:[%s12 + $0xc] sm:$0xf]
    %v1389 = vld [vmem:[%s12 + $0x10] sm:$0xf]
    %v1390 = vld [vmem:[%s12 + $0x14] sm:$0xf]
    %v1391 = vld [vmem:[%s12 + $0x18] sm:$0xf]
    %v1392 = vld [vmem:[%s12 + $0x1c] sm:$0xf]
    %v1401 = vunpack.c.l.b16 %v1385
    %v1402 = vunpack.c.l.b16 %v1386
    %v1403 = vunpack.c.l.b16 %v1387
    %v1404 = vunpack.c.l.b16 %v1388
    %v1405 = vunpack.c.l.b16 %v1389
    %v1406 = vunpack.c.l.b16 %v1390
    %v1407 = vunpack.c.l.b16 %v1391
    %v1408 = vunpack.c.l.b16 %v1392
    %v1409 = vpack.c.b16 %v1402, %v1401
    %v1410 = vpack.c.b16 %v1404, %v1403
    %v1411 = vpack.c.b16 %v1406, %v1405
    %v1412 = vpack.c.b16 %v1408, %v1407
    %v1418 = vsel %vm1044, %v1384, 0
    %1420 = vmatprep.subr.bf16.mxu0 0
    %1421 = vmatpush1.bf16.msra.mxu0 %v1409
    %1422 = vmatprep.subr.bf16.mxu0 0
    %1423 = vmatpush1.bf16.msra.mxu0 %v1410
    %1424 = vmatprep.subr.bf16.mxu0 0
    %1425 = vmatpush1.bf16.msra.mxu0 %v1411
    %1426 = vmatprep.subr.bf16.mxu0 0
    %1427 = vmatpush1.bf16.msra.mxu0 %v1412
    %1428 = vmatprep.subr.bf16.mxu0 0
    %1429 = vmatpush1.bf16.msra.mxu0 0
    %1430 = vmatprep.subr.bf16.mxu0 0
    %1431 = vmatpush1.bf16.msra.mxu0 0
    %1432 = vmatprep.subr.bf16.mxu0 0
    %1433 = vmatpush1.bf16.msra.mxu0 0
    %1434 = vmatprep.subr.bf16.mxu0 0
    %1435 = vmatpush1.bf16.msra.mxu0 0
    %1436 = vmatprep.subr.bf16.mxu0 0
    %1437 = vmatpush1.bf16.msra.mxu0 0
    %1438 = vmatprep.subr.bf16.mxu0 0
    %1439 = vmatpush1.bf16.msra.mxu0 0
    %1440 = vmatprep.subr.bf16.mxu0 0
    %1441 = vmatpush1.bf16.msra.mxu0 0
    %1442 = vmatprep.subr.bf16.mxu0 0
    %1443 = vmatpush1.bf16.msra.mxu0 0
    %1444 = vmatprep.subr.bf16.mxu0 0
    %1445 = vmatpush1.bf16.msra.mxu0 0
    %1446 = vmatprep.subr.bf16.mxu0 0
    %1447 = vmatpush1.bf16.msra.mxu0 0
    %1448 = vmatprep.subr.bf16.mxu0 0
    %1449 = vmatpush1.bf16.msra.mxu0 0
    %1450 = vmatprep.subr.bf16.mxu0 0
    %1451 = vmatpush1.bf16.msra.mxu0 0
    %1452 = vmatprep.mubr.bf16.mxu0 0
    %1453 = vmatmul.mubr.bf16.gmra.mrb[0].mxu0 %v1418
    %v1454 = vpop.f32.mrb[0].mxu0
    %v1455 = vadd.f32 0.0, %v1454
    %v1456 = vpop.f32.mrb[0].mxu0
    %v1457 = vpop.f32.mrb[0].mxu0
    %v1458 = vpop.f32.mrb[0].mxu0
    %1459 = vdwg.mxu0
    %v1460 = vtanh.pop %v1455
    %1462 = vrot.lane.b32.xlu0 %v1460, 32
    %v1463 = vpop.permute.xlu0 %1462
    %v1465 = vsel %vm226, %v1088, %v1463
    %v1466 = vpack.c.bf16 %v1465, %v1465
    %v1467 = vld [vmem:[%s15] sm:$0xf]
    %v1468 = vld [vmem:[%s15 + $0x4] sm:$0xf]
    %v1469 = vld [vmem:[%s15 + $0x8] sm:$0xf]
    %v1470 = vld [vmem:[%s15 + $0xc] sm:$0xf]
    %v1471 = vld [vmem:[%s15 + $0x10] sm:$0xf]
    %v1472 = vld [vmem:[%s15 + $0x14] sm:$0xf]
    %v1473 = vld [vmem:[%s15 + $0x18] sm:$0xf]
    %v1474 = vld [vmem:[%s15 + $0x1c] sm:$0xf]
    %v1475 = vld [vmem:[%s16] sm:$0x1]
    %v1477 = vlaneseq
    %v1478 = vshrl.u32 %v1477, 7
    %v1479 = vsub.s32 0, %v1478
    %v1480 = vrot.slane %v1475, %v1479
    %v1490 = vunpack.c.l.b16 %v1467
    %v1491 = vunpack.c.l.b16 %v1468
    %v1492 = vunpack.c.l.b16 %v1469
    %v1493 = vunpack.c.l.b16 %v1470
    %v1494 = vunpack.c.l.b16 %v1471
    %v1495 = vunpack.c.l.b16 %v1472
    %v1496 = vunpack.c.l.b16 %v1473
    %v1497 = vunpack.c.l.b16 %v1474
    %v1498 = vpack.c.b16 %v1491, %v1490
    %v1499 = vpack.c.b16 %v1493, %v1492
    %v1500 = vpack.c.b16 %v1495, %v1494
    %v1501 = vpack.c.b16 %v1497, %v1496
    %v1507 = vsel %vm1044, %v1466, 0
    %1509 = vmatprep.subr.bf16.mxu0 0
    %1510 = vmatpush1.bf16.msra.mxu0 %v1498
    %1511 = vmatprep.subr.bf16.mxu0 0
    %1512 = vmatpush1.bf16.msra.mxu0 %v1499
    %1513 = vmatprep.subr.bf16.mxu0 0
    %1514 = vmatpush1.bf16.msra.mxu0 %v1500
    %1515 = vmatprep.subr.bf16.mxu0 0
    %1516 = vmatpush1.bf16.msra.mxu0 %v1501
    %1517 = vmatprep.subr.bf16.mxu0 0
    %1518 = vmatpush1.bf16.msra.mxu0 0
    %1519 = vmatprep.subr.bf16.mxu0 0
    %1520 = vmatpush1.bf16.msra.mxu0 0
    %1521 = vmatprep.subr.bf16.mxu0 0
    %1522 = vmatpush1.bf16.msra.mxu0 0
    %1523 = vmatprep.subr.bf16.mxu0 0
    %1524 = vmatpush1.bf16.msra.mxu0 0
    %1525 = vmatprep.subr.bf16.mxu0 0
    %1526 = vmatpush1.bf16.msra.mxu0 0
    %1527 = vmatprep.subr.bf16.mxu0 0
    %1528 = vmatpush1.bf16.msra.mxu0 0
    %1529 = vmatprep.subr.bf16.mxu0 0
    %1530 = vmatpush1.bf16.msra.mxu0 0
    %1531 = vmatprep.subr.bf16.mxu0 0
    %1532 = vmatpush1.bf16.msra.mxu0 0
    %1533 = vmatprep.subr.bf16.mxu0 0
    %1534 = vmatpush1.bf16.msra.mxu0 0
    %1535 = vmatprep.subr.bf16.mxu0 0
    %1536 = vmatpush1.bf16.msra.mxu0 0
    %1537 = vmatprep.subr.bf16.mxu0 0
    %1538 = vmatpush1.bf16.msra.mxu0 0
    %1539 = vmatprep.subr.bf16.mxu0 0
    %1540 = vmatpush1.bf16.msra.mxu0 0
    %1541 = vmatprep.mubr.bf16.mxu0 0
    %1542 = vmatmul.mubr.bf16.gmra.mrb[0].mxu0 %v1507
    %v1543 = vpop.f32.mrb[0].mxu0
    %v1544 = vadd.f32 %v1480, %v1543
    %v1545 = vpop.f32.mrb[0].mxu0
    %v1546 = vpop.f32.mrb[0].mxu0
    %v1547 = vpop.f32.mrb[0].mxu0
    %1548 = vdwg.mxu0
    %1549 = vrot.lane.b32.xlu0 %v198, 32
    %v1550 = vpop.permute.xlu0 %1549
    %vm1552 = vcmask 254976
    %1553 = vst.msk [vmem:[#allocation2] sm:$0x3] %vm1552, %v1550
    %vm1554 = vcmask 517376
    %1555 = vst.msk [vmem:[#allocation2] sm:$0x3] %vm1554, %v192
    %v1558 = vcombine.low %v904, %v906
    %v1560 = vunpack.c.l.s4 1966171168
    %v1561 = vunpack.c.0.s8 %v1560
    %v1562 = vlaneseq
    %v1563 = vshrl.u32 %v1562, 7
    %v1564 = vsub.s32 %v1561, %v1563
    %v1565 = vrot.slane %v1558, %v1564
    %v1567 = vunpack.c.l.s4 1966171168
    %v1568 = vunpack.c.0.s8 %v1567
    %v1569 = vlaneseq
    %v1570 = vshrl.u32 %v1569, 7
    %v1571 = vsub.s32 %v1568, %v1570
    %v1572 = vrot.slane %v1565, %v1571
    %1573 = vrot.lane.b32.xlu0 %v1572, 64
    %v1574 = vpop.permute.xlu0 %1573
    %vm1576 = vcmask 583168
    %1577 = vst.msk [vmem:[#allocation2] sm:$0x3] %vm1576, %v1574
    %1579 = vrot.lane.b32.xlu0 %v1544, 72
    %v1580 = vpop.permute.xlu0 %1579
    %vm1582 = vcmask 632384
    %1583 = vst.msk [vmem:[#allocation2] sm:$0x3] %vm1582, %v1580
    %vm1584 = vcmask 1042032
    %1585 = vst.msk [vmem:[#allocation2] sm:$0x3] %vm1584, 0.0
    // Predicated region
    $region70: #{tpu_custom_call.1} parent=1 // pred_check
      _
    $region71: #{tpu_custom_call.1} parent=1 // pred_check_branch
      %1587 = sbr.rel (0) target = $region73
    $region72: #{tpu_custom_call.1} parent=1 // pred_region
      %s1589 = ssub.s32 32, 32
      %1590 = vsyncadd [#allocation3], %s1589
      %s1592 = sshll.u32 [#allocation2], 4
      %s1593 = int_to_ptr.vmem [resolvable:$true] %s1592
      %1595 = dma.vmem_to_hbm [thread:$0]  %s1593, 32, %s17, [#allocation3]
    $region73: #{tpu_custom_call.1} parent=1 // pred_fallthru
      _
    // Predicated region
    $region74: #{tpu_custom_call.1} parent=1 // pred_check
      _
    $region75: #{tpu_custom_call.1} parent=1 // pred_check_branch
      %1597 = sbr.rel (0) target = $region77
    $region76: #{tpu_custom_call.1} parent=1 // pred_region
      %1598 = dma.done [#allocation3], 32
    $region77: #{tpu_custom_call.1} parent=1 // pred_fallthru
      _
    %1599 = vsyncpa [#allocation3], 1

</llo_original>
